<compile_context>
chip_gen: v7x
topology: tpu7x:2x2x1
jax: 0.10.0
libtpu: 0.0.40
codegen_flags: <defaults>
</compile_context>

<pallas_src>
import math
from functools import partial

import numpy as np
import jax
import jax.numpy as jnp
from jax.experimental import pallas as pl
from jax.experimental.pallas import tpu as pltpu

LN_EPS = 1e-5


# ----------------------------- static helpers (numpy) ----------------------------

def _relative_position_index(ws):
    coords = np.stack(np.meshgrid(np.arange(ws), np.arange(ws), indexing="ij"))
    coords = coords.reshape(2, -1)                                  # (2, N)
    rel = coords[:, :, None] - coords[:, None, :]                   # (2, N, N)
    rel = rel.transpose(1, 2, 0).astype(np.int64)                   # (N, N, 2)
    rel[:, :, 0] += ws - 1
    rel[:, :, 1] += ws - 1
    rel[:, :, 0] *= 2 * ws - 1
    return rel.sum(-1)                                              # (N, N)


def _shift_attn_mask(H, W, ws, shift):
    """Per-window additive mask (nW, N, N) for shifted blocks (reference path)."""
    img = np.zeros((1, H, W, 1), np.float32)
    cnt = 0
    for hs in (slice(0, -ws), slice(-ws, -shift), slice(-shift, None)):
        for wsl in (slice(0, -ws), slice(-ws, -shift), slice(-shift, None)):
            img[:, hs, wsl, :] = cnt
            cnt += 1
    mw = (img.reshape(1, H // ws, ws, W // ws, ws, 1)
             .transpose(0, 1, 3, 2, 4, 5).reshape(-1, ws * ws))     # (nW, N)
    am = mw[:, None, :] - mw[:, :, None]                            # (nW, N, N)
    return np.where(am != 0, -100.0, 0.0).astype(np.float32)


def _dense_attn_bias(table_np, ws, H, W, shift, num_heads):
    """Dense additive attention bias (nh, HW, HW) over raster-ordered tokens.

    Encodes: cyclic shift, (shifted-)window partition, relative-position bias
    and the shift-region mask.  Cross-window pairs get -1e9 (excluded).
    """
    N = ws * ws
    HW = H * W
    idx = _relative_position_index(ws)                               # (N, N)
    rel = table_np[idx.reshape(-1)].reshape(N, N, num_heads)
    rel = rel.transpose(2, 0, 1).astype(np.float32)                  # (nh, N, N)

    rr, cc = np.meshgrid(np.arange(H), np.arange(W), indexing="ij")
    r = rr.reshape(-1)
    c = cc.reshape(-1)                                               # raster order
    rp = (r - shift) % H                                             # rolled coords
    cp = (c - shift) % W
    win = (rp // ws) * (W // ws) + (cp // ws)                        # window id
    iw = (rp % ws) * ws + (cp % ws)                                  # idx in window

    if shift > 0:
        img = np.zeros((H, W), np.int32)
        cnt = 0
        for hs in (slice(0, -ws), slice(-ws, -shift), slice(-shift, None)):
            for wsl in (slice(0, -ws), slice(-ws, -shift), slice(-shift, None)):
                img[hs, wsl] = cnt
                cnt += 1
        region = img[rp, cp]
    else:
        region = np.zeros(HW, np.int32)

    same_win = win[:, None] == win[None, :]                          # (HW, HW)
    shift_mask = np.where(region[:, None] == region[None, :],
                          0.0, -100.0).astype(np.float32)
    rb = rel[:, iw[:, None], iw[None, :]]                            # (nh, HW, HW)
    bias = np.where(same_win[None, :, :], rb + shift_mask[None, :, :],
                    np.float32(-1e9)).astype(np.float32)
    return bias


# ----------------------------- in-kernel math helpers -----------------------------

def _layernorm(x, g, b):
    mu = jnp.mean(x, axis=-1, keepdims=True)
    var = jnp.mean(jnp.square(x - mu), axis=-1, keepdims=True)
    return (x - mu) * jax.lax.rsqrt(var + LN_EPS) * g + b


def _gelu_erf(x):
    # Exact (erf-based) GELU, matching PyTorch nn.GELU default.
    # Abramowitz & Stegun 7.1.26 rational (|abs err| <= 1.5e-7); the rational's
    # divide uses the EUP approximate reciprocal (separate VLIW slot).
    a1, a2, a3, a4, a5 = 0.254829592, -0.284496736, 1.421413741, -1.453152027, 1.061405429
    pp = 0.3275911
    u = x * (1.0 / math.sqrt(2.0))
    s = jnp.where(u >= 0.0, 1.0, -1.0)
    au = jnp.abs(u)
    t = pl.reciprocal(1.0 + pp * au, approx=True)
    poly = ((((a5 * t + a4) * t + a3) * t + a2) * t + a1) * t
    erf = s * (1.0 - poly * jnp.exp(-au * au))
    return 0.5 * x * (1.0 + erf)


# ----------------------------- fused Swin block kernel ----------------------------

def _swin_block_kernel(x_ref, bias_ref, g1_ref, b1_ref, wqkv_ref, bqkv_ref,
                       wproj_ref, bproj_ref, g2_ref, b2_ref,
                       w1_ref, bf1_ref, w2_ref, bf2_ref, o_ref,
                       *, num_heads):
    """One whole image (T = H*W raster-ordered tokens) per grid step.

    out = x1 + fc2(gelu(fc1(LN2(x1)))),  x1 = x + proj(attn(LN1(x)))
    where attn is dense over T tokens with the window structure folded into
    the additive bias (nh, T, T).
    """
    bf16 = jnp.bfloat16
    f32 = jnp.float32

    x = x_ref[...]                                       # (T, C) f32
    T, C = x.shape
    hd = C // num_heads

    # ---- attention branch -------------------------------------------------------
    xn = _layernorm(x, g1_ref[...], b1_ref[...])
    qkv = jnp.dot(xn.astype(bf16), wqkv_ref[...],
                  preferred_element_type=f32) + bqkv_ref[...]        # (T, 3C)
    q = qkv[:, 0 * C:1 * C]                               # qk scale already folded in
    k = qkv[:, 1 * C:2 * C]
    v = qkv[:, 2 * C:3 * C]

    lane = jax.lax.broadcasted_iota(jnp.int32, (1, C), 1)
    ctx = jnp.zeros((T, C), f32)
    for h in range(num_heads):                            # static & small
        qh = q[:, h * hd:(h + 1) * hd].astype(bf16)       # (T, hd)
        kh = k[:, h * hd:(h + 1) * hd].astype(bf16)
        s = jnp.einsum('qd,kd->qk', qh, kh,
                       preferred_element_type=f32)        # dense (T, T)
        s = s + bias_ref[h]                               # rel-pos + shift + window mask
        s = s - jnp.max(s, axis=-1, keepdims=True)
        p = jnp.exp(s)
        p = p * pl.reciprocal(jnp.sum(p, axis=-1, keepdims=True), approx=True)
        # Accumulate this head's context at full (T, C) width: mask V's other
        # head columns to zero so no concat / per-head narrow proj is needed.
        head_m = jnp.logical_and(lane >= h * hd, lane < (h + 1) * hd)
        vh = jnp.where(head_m, v, 0.0).astype(bf16)       # (T, C)
        ctx = ctx + jnp.einsum('qk,kc->qc', p.astype(bf16), vh,
                               preferred_element_type=f32)
    # single K=C output projection
    x1 = x + jnp.dot(ctx.astype(bf16), wproj_ref[...],
                     preferred_element_type=f32) + bproj_ref[...]

    # ---- MLP branch ---------------------------------------------------------------
    x1n = _layernorm(x1, g2_ref[...], b2_ref[...])
    h1 = jnp.dot(x1n.astype(bf16), w1_ref[...],
                 preferred_element_type=f32) + bf1_ref[...]
    h1 = _gelu_erf(h1)
    y = jnp.dot(h1.astype(bf16), w2_ref[...],
                preferred_element_type=f32) + bf2_ref[...]
    o_ref[...] = x1 + y
    # TODO(synk): for production C (multiple of 128) present a lane-dense
    # (.., 128) output slab; at C=32 the in-kernel relayout would cost more
    # than the masked stores.


# ----------------------------- block / layer wrappers -----------------------------

def swin_block_forward(x, p, *, H, W, num_heads):
    B, L, C = x.shape
    HW = H * W
    assert L == HW, "input feature has wrong size"
    hidden = p["w_fc1_p"].shape[1]
    nh = num_heads

    xt = x.reshape(B * HW, C)                             # free view, raster order
    bias = p["attn_bias_dense"]                           # (nh, HW, HW) f32

    c2 = lambda b: (0, 0)
    c3 = lambda b: (0, 0, 0)

    block_fn = pl.pallas_call(
        partial(_swin_block_kernel, num_heads=nh),
        out_shape=jax.ShapeDtypeStruct((B * HW, C), jnp.float32),
        grid=(B,),                                        # >= 2 steps for B >= 2
        in_specs=[
            pl.BlockSpec((HW, C), lambda b: (b, 0)),      # x (one image per step)
            pl.BlockSpec((nh, HW, HW), c3),               # dense attn bias (shared)
            pl.BlockSpec((1, C), c2),                     # g1
            pl.BlockSpec((1, C), c2),                     # b1
            pl.BlockSpec((C, 3 * C), c2),                 # wqkv  (bf16, q-scaled)
            pl.BlockSpec((1, 3 * C), c2),                 # bqkv  (f32,  q-scaled)
            pl.BlockSpec((C, C), c2),                     # wproj (bf16)
            pl.BlockSpec((1, C), c2),                     # bproj
            pl.BlockSpec((1, C), c2),                     # g2
            pl.BlockSpec((1, C), c2),                     # b2
            pl.BlockSpec((C, hidden), c2),                # w_fc1 (bf16)
            pl.BlockSpec((1, hidden), c2),                # b_fc1
            pl.BlockSpec((hidden, C), c2),                # w_fc2 (bf16)
            pl.BlockSpec((1, C), c2),                     # b_fc2
        ],
        out_specs=pl.BlockSpec((HW, C), lambda b: (b, 0)),
        compiler_params=pltpu.CompilerParams(
            dimension_semantics=("parallel",)),
    )
    ow = block_fn(xt, bias,
                  p["g1"], p["b1"],
                  p["wqkv_p"], p["bqkv_p"],
                  p["wproj_p"], p["bproj"],
                  p["g2"], p["b2"],
                  p["w_fc1_p"], p["b_fc1"],
                  p["w_fc2_p"], p["b_fc2"])
    return ow.reshape(B, L, C)


def basic_layer_forward(x, block_params, *, H, W, num_heads):
    # depth blocks; even blocks shift=0, odd blocks shift=window_size//2
    # (already baked into each block's dense bias).  downsample=None.
    for p in block_params:
        x = swin_block_forward(x, p, H=H, W=W, num_heads=num_heads)
    return x


# ----------------------------- parameter init --------------------------------------

def init_block_params(key, dim, num_heads, window_size, H, W, shift_size, mlp_ratio):
    assert H % window_size == 0 and W % window_size == 0
    N = window_size * window_size
    hidden = int(dim * mlp_ratio)
    hd = dim // num_heads
    scale = hd ** -0.5
    ks = jax.random.split(key, 5)
    std = 0.02
    bf16 = jnp.bfloat16

    p = {
        "g1": jnp.ones((1, dim), jnp.float32),
        "b1": jnp.zeros((1, dim), jnp.float32),
        "g2": jnp.ones((1, dim), jnp.float32),
        "b2": jnp.zeros((1, dim), jnp.float32),
        "wqkv": std * jax.random.normal(ks[0], (dim, 3 * dim), jnp.float32),
        "bqkv": jnp.zeros((1, 3 * dim), jnp.float32),
        "wproj": std * jax.random.normal(ks[1], (dim, dim), jnp.float32),
        "bproj": jnp.zeros((1, dim), jnp.float32),
        "w_fc1": std * jax.random.normal(ks[2], (dim, hidden), jnp.float32),
        "b_fc1": jnp.zeros((1, hidden), jnp.float32),
        "w_fc2": std * jax.random.normal(ks[3], (hidden, dim), jnp.float32),
        "b_fc2": jnp.zeros((1, dim), jnp.float32),
    }

    # --- one-time kernel-side weight prep: fold qk scale into q cols, cast to bf16
    qscale = jnp.concatenate(
        [jnp.full((dim,), scale, jnp.float32), jnp.ones((2 * dim,), jnp.float32)], 0)
    p["wqkv_p"] = (p["wqkv"] * qscale[None, :]).astype(bf16)
    p["bqkv_p"] = p["bqkv"] * qscale[None, :]
    p["wproj_p"] = p["wproj"].astype(bf16)
    p["w_fc1_p"] = p["w_fc1"].astype(bf16)
    p["w_fc2_p"] = p["w_fc2"].astype(bf16)

    # --- relative position bias table + masks
    table = std * jax.random.normal(
        ks[4], ((2 * window_size - 1) ** 2, num_heads), jnp.float32)

    # windowed bias for the pure-JAX reference (unchanged semantics)
    idx = _relative_position_index(window_size)
    rel_bias = table[idx.reshape(-1)].reshape(N, N, num_heads).transpose(2, 0, 1)
    if shift_size > 0:
        mask = jnp.asarray(_shift_attn_mask(H, W, window_size, shift_size))
        p["attn_bias"] = rel_bias[None, :, :, :] + mask[:, None, :, :]   # (nW,nh,N,N)
    else:
        p["attn_bias"] = rel_bias[None, :, :, :]                         # (1,nh,N,N)

    # dense bias for the Pallas kernel (shift + window structure folded in)
    p["attn_bias_dense"] = jnp.asarray(
        _dense_attn_bias(np.asarray(table), window_size, H, W, shift_size, num_heads))
    return p


# ----------------------------- pure-JAX reference -----------------------------------

def _window_partition(x, ws):
    B, H, W, C = x.shape
    x = x.reshape(B, H // ws, ws, W // ws, ws, C)
    return x.transpose(0, 1, 3, 2, 4, 5).reshape(-1, ws, ws, C)


def _window_reverse(windows, ws, H, W):
    B = windows.shape[0] // ((H // ws) * (W // ws))
    x = windows.reshape(B, H // ws, W // ws, ws, ws, -1)
    return x.transpose(0, 1, 3, 2, 4, 5).reshape(B, H, W, -1)


def _block_ref(x, p, *, H, W, ws, shift, nh):
    B, L, C = x.shape
    hd = C // nh
    scale = hd ** -0.5
    N = ws * ws

    def ln(v, g, b):
        mu = v.mean(-1, keepdims=True)
        var = ((v - mu) ** 2).mean(-1, keepdims=True)
        return (v - mu) / jnp.sqrt(var + LN_EPS) * g[0] + b[0]

    shortcut = x
    xi = ln(x, p["g1"], p["b1"]).reshape(B, H, W, C)
    if shift > 0:
        xi = jnp.roll(xi, (-shift, -shift), axis=(1, 2))
    xw = _window_partition(xi, ws).reshape(-1, N, C)
    qkv = xw @ p["wqkv"] + p["bqkv"][0]
    q, k, v = jnp.split(qkv, 3, axis=-1)
    q = q.reshape(-1, N, nh, hd).transpose(0, 2, 1, 3) * scale
    k = k.reshape(-1, N, nh, hd).transpose(0, 2, 1, 3)
    v = v.reshape(-1, N, nh, hd).transpose(0, 2, 1, 3)
    attn = q @ k.transpose(0, 1, 3, 2)
    ab = p["attn_bias"]
    if ab.shape[0] != 1:
        ab = jnp.tile(ab, (attn.shape[0] // ab.shape[0], 1, 1, 1))
    attn = jax.nn.softmax(attn + ab, axis=-1)
    out = (attn @ v).transpose(0, 2, 1, 3).reshape(-1, N, C)
    out = out @ p["wproj"] + p["bproj"][0]
    xs = _window_reverse(out.reshape(-1, ws, ws, C), ws, H, W)
    if shift > 0:
        xs = jnp.roll(xs, (shift, shift), axis=(1, 2))
    x = shortcut + xs.reshape(B, L, C)
    xn = ln(x, p["g2"], p["b2"])
    h = jax.nn.gelu(xn @ p["w_fc1"] + p["b_fc1"][0], approximate=False)
    return x + h @ p["w_fc2"] + p["b_fc2"][0]


def basic_layer_ref(x, block_params, *, H, W, window_size, num_heads):
    for i, p in enumerate(block_params):
        shift = 0 if i % 2 == 0 else window_size // 2
        x = _block_ref(x, p, H=H, W=W, ws=window_size, shift=shift, nh=num_heads)
    return x


# ----------------------------- main --------------------------------------------------

if __name__ == "__main__":
    B, H, W, C = 2, 8, 8, 32
    window_size, num_heads, depth, mlp_ratio = 4, 2, 2, 4.0

    key = jax.random.PRNGKey(0)
    kx, kp = jax.random.split(key)
    x = jax.random.normal(kx, (B, H * W, C), jnp.float32)

    bkeys = jax.random.split(kp, depth)
    blocks = [
        init_block_params(bkeys[i], C, num_heads, window_size, H, W,
                          0 if i % 2 == 0 else window_size // 2, mlp_ratio)
        for i in range(depth)
    ]

    fwd = jax.jit(partial(basic_layer_forward, H=H, W=W, num_heads=num_heads))
    out = fwd(x, blocks)
    jax.block_until_ready(out)
    assert out.shape == (B, H * W, C)

    ref = basic_layer_ref(x, blocks, H=H, W=W,
                          window_size=window_size, num_heads=num_heads)
    # bf16-in / f32-acc matmuls + EUP approx reciprocals -> relaxed tolerance
    assert jnp.allclose(out, ref, atol=2e-2, rtol=2e-2), float(
        jnp.max(jnp.abs(out - ref)))

    print("KERNEL_OK")
</pallas_src>

<mosaic_0001>
module attributes {stable_mosaic.version = 11 : i64} {
  func.func @_swin_block_kernel(%arg0: i32, %arg1: memref<64x32xf32, #tpu.memory_space<vmem>>, %arg2: memref<2x64x64xf32, #tpu.memory_space<vmem>>, %arg3: memref<1x32xf32, #tpu.memory_space<vmem>>, %arg4: memref<1x32xf32, #tpu.memory_space<vmem>>, %arg5: memref<32x96xbf16, #tpu.memory_space<vmem>>, %arg6: memref<1x96xf32, #tpu.memory_space<vmem>>, %arg7: memref<32x32xbf16, #tpu.memory_space<vmem>>, %arg8: memref<1x32xf32, #tpu.memory_space<vmem>>, %arg9: memref<1x32xf32, #tpu.memory_space<vmem>>, %arg10: memref<1x32xf32, #tpu.memory_space<vmem>>, %arg11: memref<32x128xbf16, #tpu.memory_space<vmem>>, %arg12: memref<1x128xf32, #tpu.memory_space<vmem>>, %arg13: memref<128x32xbf16, #tpu.memory_space<vmem>>, %arg14: memref<1x32xf32, #tpu.memory_space<vmem>>, %arg15: memref<64x32xf32, #tpu.memory_space<vmem>>) attributes {dimension_semantics = [#tpu.dimension_semantics<parallel>], iteration_bounds = array<i64: 2>, scalar_prefetch = 0 : i64, scratch_operands = 0 : i64, tpu.core_type = #tpu.core_type<tc>, window_params = [{transform_indices = @transform_0, window_bounds = array<i64: 64, 32>}, {pipeline_mode = #tpu.pipeline_mode<synchronous>, transform_indices = @transform_1, window_bounds = array<i64: 2, 64, 64>}, {pipeline_mode = #tpu.pipeline_mode<synchronous>, transform_indices = @transform_2, window_bounds = array<i64: 1, 32>}, {pipeline_mode = #tpu.pipeline_mode<synchronous>, transform_indices = @transform_3, window_bounds = array<i64: 1, 32>}, {pipeline_mode = #tpu.pipeline_mode<synchronous>, transform_indices = @transform_4, window_bounds = array<i64: 32, 96>}, {pipeline_mode = #tpu.pipeline_mode<synchronous>, transform_indices = @transform_5, window_bounds = array<i64: 1, 96>}, {pipeline_mode = #tpu.pipeline_mode<synchronous>, transform_indices = @transform_6, window_bounds = array<i64: 32, 32>}, {pipeline_mode = #tpu.pipeline_mode<synchronous>, transform_indices = @transform_7, window_bounds = array<i64: 1, 32>}, {pipeline_mode = #tpu.pipeline_mode<synchronous>, transform_indices = @transform_8, window_bounds = array<i64: 1, 32>}, {pipeline_mode = #tpu.pipeline_mode<synchronous>, transform_indices = @transform_9, window_bounds = array<i64: 1, 32>}, {pipeline_mode = #tpu.pipeline_mode<synchronous>, transform_indices = @transform_10, window_bounds = array<i64: 32, 128>}, {pipeline_mode = #tpu.pipeline_mode<synchronous>, transform_indices = @transform_11, window_bounds = array<i64: 1, 128>}, {pipeline_mode = #tpu.pipeline_mode<synchronous>, transform_indices = @transform_12, window_bounds = array<i64: 128, 32>}, {pipeline_mode = #tpu.pipeline_mode<synchronous>, transform_indices = @transform_13, window_bounds = array<i64: 1, 32>}, {transform_indices = @transform_14, window_bounds = array<i64: 64, 32>}]} {
    %c0 = arith.constant 0 : index
    %c0_0 = arith.constant 0 : index
    %0 = vector.load %arg1[%c0, %c0_0] : memref<64x32xf32, #tpu.memory_space<vmem>>, vector<64x32xf32>
    %c0_1 = arith.constant 0 : index
    %c0_2 = arith.constant 0 : index
    %1 = vector.load %arg3[%c0_1, %c0_2] : memref<1x32xf32, #tpu.memory_space<vmem>>, vector<1x32xf32>
    %c0_3 = arith.constant 0 : index
    %c0_4 = arith.constant 0 : index
    %2 = vector.load %arg4[%c0_3, %c0_4] : memref<1x32xf32, #tpu.memory_space<vmem>>, vector<1x32xf32>
    %cst = arith.constant dense<0.000000e+00> : vector<64xf32>
    %3 = vector.multi_reduction <add>, %0, %cst [1] : vector<64x32xf32> to vector<64xf32>
    %4 = vector.shape_cast %3 : vector<64xf32> to vector<64x1xf32>
    %cst_5 = arith.constant 3.200000e+01 : f32
    %5 = vector.broadcast %cst_5 : f32 to vector<64x1xf32>
    %6 = arith.divf %4, %5 : vector<64x1xf32>
    %7 = vector.broadcast %6 : vector<64x1xf32> to vector<64x32xf32>
    %8 = arith.subf %0, %7 : vector<64x32xf32>
    %9 = arith.mulf %8, %8 : vector<64x32xf32>
    %cst_6 = arith.constant dense<0.000000e+00> : vector<64xf32>
    %10 = vector.multi_reduction <add>, %9, %cst_6 [1] : vector<64x32xf32> to vector<64xf32>
    %11 = vector.shape_cast %10 : vector<64xf32> to vector<64x1xf32>
    %cst_7 = arith.constant 3.200000e+01 : f32
    %12 = vector.broadcast %cst_7 : f32 to vector<64x1xf32>
    %13 = arith.divf %11, %12 : vector<64x1xf32>
    %14 = vector.broadcast %6 : vector<64x1xf32> to vector<64x32xf32>
    %15 = arith.subf %0, %14 : vector<64x32xf32>
    %cst_8 = arith.constant 9.99999974E-6 : f32
    %16 = vector.broadcast %cst_8 : f32 to vector<64x1xf32>
    %17 = arith.addf %13, %16 : vector<64x1xf32>
    %18 = math.rsqrt %17 : vector<64x1xf32>
    %19 = vector.broadcast %18 : vector<64x1xf32> to vector<64x32xf32>
    %20 = arith.mulf %15, %19 : vector<64x32xf32>
    %21 = vector.broadcast %1 : vector<1x32xf32> to vector<64x32xf32>
    %22 = arith.mulf %20, %21 : vector<64x32xf32>
    %23 = vector.broadcast %2 : vector<1x32xf32> to vector<64x32xf32>
    %24 = arith.addf %22, %23 : vector<64x32xf32>
    %25 = arith.truncf %24 : vector<64x32xf32> to vector<64x32xbf16>
    %c0_9 = arith.constant 0 : index
    %c0_10 = arith.constant 0 : index
    %26 = vector.load %arg5[%c0_9, %c0_10] : memref<32x96xbf16, #tpu.memory_space<vmem>>, vector<32x96xbf16>
    %cst_11 = arith.constant dense<0.000000e+00> : vector<64x96xf32>
    %27 = tpu.matmul %25, %26, %cst_11 {dimension_numbers = #tpu.dot_dimension_numbers<[1], [0], [0], [1], [0, 0, 1, 1], [], []>} : vector<64x32xbf16>, vector<32x96xbf16>, vector<64x96xf32> -> vector<64x96xf32>
    %c0_12 = arith.constant 0 : index
    %c0_13 = arith.constant 0 : index
    %28 = vector.load %arg6[%c0_12, %c0_13] : memref<1x96xf32, #tpu.memory_space<vmem>>, vector<1x96xf32>
    %29 = vector.broadcast %28 : vector<1x96xf32> to vector<64x96xf32>
    %30 = arith.addf %27, %29 : vector<64x96xf32>
    %31 = vector.extract_strided_slice %30 {offsets = [0, 0], sizes = [64, 32], strides = [1, 1]} : vector<64x96xf32> to vector<64x32xf32>
    %32 = vector.extract_strided_slice %30 {offsets = [0, 32], sizes = [64, 32], strides = [1, 1]} : vector<64x96xf32> to vector<64x32xf32>
    %33 = vector.extract_strided_slice %30 {offsets = [0, 64], sizes = [64, 32], strides = [1, 1]} : vector<64x96xf32> to vector<64x32xf32>
    %34 = tpu.iota {dimensions = array<i32: 1>} : vector<1x32xi32>
    %cst_14 = arith.constant 0.000000e+00 : f32
    %35 = vector.broadcast %cst_14 : f32 to vector<64x32xf32>
    %36 = vector.extract_strided_slice %31 {offsets = [0, 0], sizes = [64, 16], strides = [1, 1]} : vector<64x32xf32> to vector<64x16xf32>
    %37 = arith.truncf %36 : vector<64x16xf32> to vector<64x16xbf16>
    %38 = vector.extract_strided_slice %32 {offsets = [0, 0], sizes = [64, 16], strides = [1, 1]} : vector<64x32xf32> to vector<64x16xf32>
    %39 = arith.truncf %38 : vector<64x16xf32> to vector<64x16xbf16>
    "tpu.trace_start"() <{level = 10 : i32, message = "qd,kd->qk"}> : () -> ()
    %cst_15 = arith.constant dense<0.000000e+00> : vector<64x64xf32>
    %40 = tpu.matmul %37, %39, %cst_15 {dimension_numbers = #tpu.dot_dimension_numbers<[1], [1], [0], [0], [0, 0, 1, 0], [], []>} : vector<64x16xbf16>, vector<64x16xbf16>, vector<64x64xf32> -> vector<64x64xf32>
    "tpu.trace_stop"() : () -> ()
    %c0_16 = arith.constant 0 : index
    %c0_17 = arith.constant 0 : index
    %c0_18 = arith.constant 0 : index
    %41 = vector.load %arg2[%c0_16, %c0_17, %c0_18] : memref<2x64x64xf32, #tpu.memory_space<vmem>>, vector<1x64x64xf32>
    %42 = vector.shape_cast %41 : vector<1x64x64xf32> to vector<64x64xf32>
    %43 = arith.addf %40, %42 : vector<64x64xf32>
    %cst_19 = arith.constant dense<0xFF800000> : vector<64xf32>
    %44 = vector.multi_reduction <maximumf>, %43, %cst_19 [1] : vector<64x64xf32> to vector<64xf32>
    %45 = vector.shape_cast %44 : vector<64xf32> to vector<64x1xf32>
    %46 = vector.broadcast %45 : vector<64x1xf32> to vector<64x64xf32>
    %47 = arith.subf %43, %46 : vector<64x64xf32>
    %48 = math.exp %47 : vector<64x64xf32>
    %cst_20 = arith.constant dense<0.000000e+00> : vector<64xf32>
    %49 = vector.multi_reduction <add>, %48, %cst_20 [1] : vector<64x64xf32> to vector<64xf32>
    %50 = vector.shape_cast %49 : vector<64xf32> to vector<64x1xf32>
    %51 = tpu.reciprocal %50 {approx = true} : vector<64x1xf32> -> vector<64x1xf32>
    %52 = vector.broadcast %51 : vector<64x1xf32> to vector<64x64xf32>
    %53 = arith.mulf %48, %52 : vector<64x64xf32>
    %c0_i32 = arith.constant 0 : i32
    %54 = vector.broadcast %c0_i32 : i32 to vector<1x32xi32>
    %55 = arith.cmpi sge, %34, %54 : vector<1x32xi32>
    %c16_i32 = arith.constant 16 : i32
    %56 = vector.broadcast %c16_i32 : i32 to vector<1x32xi32>
    %57 = arith.cmpi slt, %34, %56 : vector<1x32xi32>
    %58 = arith.andi %55, %57 : vector<1x32xi1>
    %cst_21 = arith.constant 0.000000e+00 : f32
    %59 = vector.shape_cast %58 : vector<1x32xi1> to vector<1x32xi1>
    %60 = vector.broadcast %59 : vector<1x32xi1> to vector<64x32xi1>
    %61 = vector.broadcast %cst_21 : f32 to vector<64x32xf32>
    %62 = arith.select %60, %33, %61 : vector<64x32xi1>, vector<64x32xf32>
    %63 = arith.truncf %62 : vector<64x32xf32> to vector<64x32xbf16>
    %64 = arith.truncf %53 : vector<64x64xf32> to vector<64x64xbf16>
    "tpu.trace_start"() <{level = 10 : i32, message = "qk,kc->qc"}> : () -> ()
    %cst_22 = arith.constant dense<0.000000e+00> : vector<64x32xf32>
    %65 = tpu.matmul %64, %63, %cst_22 {dimension_numbers = #tpu.dot_dimension_numbers<[1], [0], [0], [1], [0, 0, 1, 1], [], []>} : vector<64x64xbf16>, vector<64x32xbf16>, vector<64x32xf32> -> vector<64x32xf32>
    "tpu.trace_stop"() : () -> ()
    %66 = arith.addf %35, %65 : vector<64x32xf32>
    %67 = vector.extract_strided_slice %31 {offsets = [0, 16], sizes = [64, 16], strides = [1, 1]} : vector<64x32xf32> to vector<64x16xf32>
    %68 = arith.truncf %67 : vector<64x16xf32> to vector<64x16xbf16>
    %69 = vector.extract_strided_slice %32 {offsets = [0, 16], sizes = [64, 16], strides = [1, 1]} : vector<64x32xf32> to vector<64x16xf32>
    %70 = arith.truncf %69 : vector<64x16xf32> to vector<64x16xbf16>
    "tpu.trace_start"() <{level = 10 : i32, message = "qd,kd->qk"}> : () -> ()
    %cst_23 = arith.constant dense<0.000000e+00> : vector<64x64xf32>
    %71 = tpu.matmul %68, %70, %cst_23 {dimension_numbers = #tpu.dot_dimension_numbers<[1], [1], [0], [0], [0, 0, 1, 0], [], []>} : vector<64x16xbf16>, vector<64x16xbf16>, vector<64x64xf32> -> vector<64x64xf32>
    "tpu.trace_stop"() : () -> ()
    %c1 = arith.constant 1 : index
    %c0_24 = arith.constant 0 : index
    %c0_25 = arith.constant 0 : index
    %72 = vector.load %arg2[%c1, %c0_24, %c0_25] : memref<2x64x64xf32, #tpu.memory_space<vmem>>, vector<1x64x64xf32>
    %73 = vector.shape_cast %72 : vector<1x64x64xf32> to vector<64x64xf32>
    %74 = arith.addf %71, %73 : vector<64x64xf32>
    %cst_26 = arith.constant dense<0xFF800000> : vector<64xf32>
    %75 = vector.multi_reduction <maximumf>, %74, %cst_26 [1] : vector<64x64xf32> to vector<64xf32>
    %76 = vector.shape_cast %75 : vector<64xf32> to vector<64x1xf32>
    %77 = vector.broadcast %76 : vector<64x1xf32> to vector<64x64xf32>
    %78 = arith.subf %74, %77 : vector<64x64xf32>
    %79 = math.exp %78 : vector<64x64xf32>
    %cst_27 = arith.constant dense<0.000000e+00> : vector<64xf32>
    %80 = vector.multi_reduction <add>, %79, %cst_27 [1] : vector<64x64xf32> to vector<64xf32>
    %81 = vector.shape_cast %80 : vector<64xf32> to vector<64x1xf32>
    %82 = tpu.reciprocal %81 {approx = true} : vector<64x1xf32> -> vector<64x1xf32>
    %83 = vector.broadcast %82 : vector<64x1xf32> to vector<64x64xf32>
    %84 = arith.mulf %79, %83 : vector<64x64xf32>
    %c16_i32_28 = arith.constant 16 : i32
    %85 = vector.broadcast %c16_i32_28 : i32 to vector<1x32xi32>
    %86 = arith.cmpi sge, %34, %85 : vector<1x32xi32>
    %c32_i32 = arith.constant 32 : i32
    %87 = vector.broadcast %c32_i32 : i32 to vector<1x32xi32>
    %88 = arith.cmpi slt, %34, %87 : vector<1x32xi32>
    %89 = arith.andi %86, %88 : vector<1x32xi1>
    %cst_29 = arith.constant 0.000000e+00 : f32
    %90 = vector.shape_cast %89 : vector<1x32xi1> to vector<1x32xi1>
    %91 = vector.broadcast %90 : vector<1x32xi1> to vector<64x32xi1>
    %92 = vector.broadcast %cst_29 : f32 to vector<64x32xf32>
    %93 = arith.select %91, %33, %92 : vector<64x32xi1>, vector<64x32xf32>
    %94 = arith.truncf %93 : vector<64x32xf32> to vector<64x32xbf16>
    %95 = arith.truncf %84 : vector<64x64xf32> to vector<64x64xbf16>
    "tpu.trace_start"() <{level = 10 : i32, message = "qk,kc->qc"}> : () -> ()
    %cst_30 = arith.constant dense<0.000000e+00> : vector<64x32xf32>
    %96 = tpu.matmul %95, %94, %cst_30 {dimension_numbers = #tpu.dot_dimension_numbers<[1], [0], [0], [1], [0, 0, 1, 1], [], []>} : vector<64x64xbf16>, vector<64x32xbf16>, vector<64x32xf32> -> vector<64x32xf32>
    "tpu.trace_stop"() : () -> ()
    %97 = arith.addf %66, %96 : vector<64x32xf32>
    %98 = arith.truncf %97 : vector<64x32xf32> to vector<64x32xbf16>
    %c0_31 = arith.constant 0 : index
    %c0_32 = arith.constant 0 : index
    %99 = vector.load %arg7[%c0_31, %c0_32] : memref<32x32xbf16, #tpu.memory_space<vmem>>, vector<32x32xbf16>
    %cst_33 = arith.constant dense<0.000000e+00> : vector<64x32xf32>
    %100 = tpu.matmul %98, %99, %cst_33 {dimension_numbers = #tpu.dot_dimension_numbers<[1], [0], [0], [1], [0, 0, 1, 1], [], []>} : vector<64x32xbf16>, vector<32x32xbf16>, vector<64x32xf32> -> vector<64x32xf32>
    %101 = arith.addf %0, %100 : vector<64x32xf32>
    %c0_34 = arith.constant 0 : index
    %c0_35 = arith.constant 0 : index
    %102 = vector.load %arg8[%c0_34, %c0_35] : memref<1x32xf32, #tpu.memory_space<vmem>>, vector<1x32xf32>
    %103 = vector.broadcast %102 : vector<1x32xf32> to vector<64x32xf32>
    %104 = arith.addf %101, %103 : vector<64x32xf32>
    %c0_36 = arith.constant 0 : index
    %c0_37 = arith.constant 0 : index
    %105 = vector.load %arg9[%c0_36, %c0_37] : memref<1x32xf32, #tpu.memory_space<vmem>>, vector<1x32xf32>
    %c0_38 = arith.constant 0 : index
    %c0_39 = arith.constant 0 : index
    %106 = vector.load %arg10[%c0_38, %c0_39] : memref<1x32xf32, #tpu.memory_space<vmem>>, vector<1x32xf32>
    %cst_40 = arith.constant dense<0.000000e+00> : vector<64xf32>
    %107 = vector.multi_reduction <add>, %104, %cst_40 [1] : vector<64x32xf32> to vector<64xf32>
    %108 = vector.shape_cast %107 : vector<64xf32> to vector<64x1xf32>
    %cst_41 = arith.constant 3.200000e+01 : f32
    %109 = vector.broadcast %cst_41 : f32 to vector<64x1xf32>
    %110 = arith.divf %108, %109 : vector<64x1xf32>
    %111 = vector.broadcast %110 : vector<64x1xf32> to vector<64x32xf32>
    %112 = arith.subf %104, %111 : vector<64x32xf32>
    %113 = arith.mulf %112, %112 : vector<64x32xf32>
    %cst_42 = arith.constant dense<0.000000e+00> : vector<64xf32>
    %114 = vector.multi_reduction <add>, %113, %cst_42 [1] : vector<64x32xf32> to vector<64xf32>
    %115 = vector.shape_cast %114 : vector<64xf32> to vector<64x1xf32>
    %cst_43 = arith.constant 3.200000e+01 : f32
    %116 = vector.broadcast %cst_43 : f32 to vector<64x1xf32>
    %117 = arith.divf %115, %116 : vector<64x1xf32>
    %118 = vector.broadcast %110 : vector<64x1xf32> to vector<64x32xf32>
    %119 = arith.subf %104, %118 : vector<64x32xf32>
    %cst_44 = arith.constant 9.99999974E-6 : f32
    %120 = vector.broadcast %cst_44 : f32 to vector<64x1xf32>
    %121 = arith.addf %117, %120 : vector<64x1xf32>
    %122 = math.rsqrt %121 : vector<64x1xf32>
    %123 = vector.broadcast %122 : vector<64x1xf32> to vector<64x32xf32>
    %124 = arith.mulf %119, %123 : vector<64x32xf32>
    %125 = vector.broadcast %105 : vector<1x32xf32> to vector<64x32xf32>
    %126 = arith.mulf %124, %125 : vector<64x32xf32>
    %127 = vector.broadcast %106 : vector<1x32xf32> to vector<64x32xf32>
    %128 = arith.addf %126, %127 : vector<64x32xf32>
    %129 = arith.truncf %128 : vector<64x32xf32> to vector<64x32xbf16>
    %c0_45 = arith.constant 0 : index
    %c0_46 = arith.constant 0 : index
    %130 = vector.load %arg11[%c0_45, %c0_46] : memref<32x128xbf16, #tpu.memory_space<vmem>>, vector<32x128xbf16>
    %cst_47 = arith.constant dense<0.000000e+00> : vector<64x128xf32>
    %131 = tpu.matmul %129, %130, %cst_47 {dimension_numbers = #tpu.dot_dimension_numbers<[1], [0], [0], [1], [0, 0, 1, 1], [], []>} : vector<64x32xbf16>, vector<32x128xbf16>, vector<64x128xf32> -> vector<64x128xf32>
    %c0_48 = arith.constant 0 : index
    %c0_49 = arith.constant 0 : index
    %132 = vector.load %arg12[%c0_48, %c0_49] : memref<1x128xf32, #tpu.memory_space<vmem>>, vector<1x128xf32>
    %133 = vector.broadcast %132 : vector<1x128xf32> to vector<64x128xf32>
    %134 = arith.addf %131, %133 : vector<64x128xf32>
    %cst_50 = arith.constant 0.707106769 : f32
    %135 = vector.broadcast %cst_50 : f32 to vector<64x128xf32>
    %136 = arith.mulf %134, %135 : vector<64x128xf32>
    %cst_51 = arith.constant 0.000000e+00 : f32
    %137 = vector.broadcast %cst_51 : f32 to vector<64x128xf32>
    %138 = arith.cmpf oge, %136, %137 : vector<64x128xf32>
    %cst_52 = arith.constant 1.000000e+00 : f32
    %cst_53 = arith.constant -1.000000e+00 : f32
    %139 = vector.broadcast %cst_52 : f32 to vector<64x128xf32>
    %140 = vector.broadcast %cst_53 : f32 to vector<64x128xf32>
    %141 = arith.select %138, %139, %140 : vector<64x128xi1>, vector<64x128xf32>
    %142 = math.absf %136 : vector<64x128xf32>
    %cst_54 = arith.constant 0.327591091 : f32
    %143 = vector.broadcast %cst_54 : f32 to vector<64x128xf32>
    %144 = arith.mulf %143, %142 : vector<64x128xf32>
    %cst_55 = arith.constant 1.000000e+00 : f32
    %145 = vector.broadcast %cst_55 : f32 to vector<64x128xf32>
    %146 = arith.addf %145, %144 : vector<64x128xf32>
    %147 = tpu.reciprocal %146 {approx = true} : vector<64x128xf32> -> vector<64x128xf32>
    %cst_56 = arith.constant 1.06140542 : f32
    %148 = vector.broadcast %cst_56 : f32 to vector<64x128xf32>
    %149 = arith.mulf %148, %147 : vector<64x128xf32>
    %cst_57 = arith.constant -1.45315206 : f32
    %150 = vector.broadcast %cst_57 : f32 to vector<64x128xf32>
    %151 = arith.addf %149, %150 : vector<64x128xf32>
    %152 = arith.mulf %151, %147 : vector<64x128xf32>
    %cst_58 = arith.constant 1.42141378 : f32
    %153 = vector.broadcast %cst_58 : f32 to vector<64x128xf32>
    %154 = arith.addf %152, %153 : vector<64x128xf32>
    %155 = arith.mulf %154, %147 : vector<64x128xf32>
    %cst_59 = arith.constant -0.284496725 : f32
    %156 = vector.broadcast %cst_59 : f32 to vector<64x128xf32>
    %157 = arith.addf %155, %156 : vector<64x128xf32>
    %158 = arith.mulf %157, %147 : vector<64x128xf32>
    %cst_60 = arith.constant 0.254829586 : f32
    %159 = vector.broadcast %cst_60 : f32 to vector<64x128xf32>
    %160 = arith.addf %158, %159 : vector<64x128xf32>
    %161 = arith.mulf %160, %147 : vector<64x128xf32>
    %cst_61 = arith.constant 0.000000e+00 : f32
    %162 = vector.broadcast %cst_61 : f32 to vector<64x128xf32>
    %163 = arith.subf %162, %142 : vector<64x128xf32>
    %164 = arith.mulf %163, %142 : vector<64x128xf32>
    %165 = math.exp %164 : vector<64x128xf32>
    %166 = arith.mulf %161, %165 : vector<64x128xf32>
    %cst_62 = arith.constant 1.000000e+00 : f32
    %167 = vector.broadcast %cst_62 : f32 to vector<64x128xf32>
    %168 = arith.subf %167, %166 : vector<64x128xf32>
    %169 = arith.mulf %141, %168 : vector<64x128xf32>
    %cst_63 = arith.constant 5.000000e-01 : f32
    %170 = vector.broadcast %cst_63 : f32 to vector<64x128xf32>
    %171 = arith.mulf %170, %134 : vector<64x128xf32>
    %cst_64 = arith.constant 1.000000e+00 : f32
    %172 = vector.broadcast %cst_64 : f32 to vector<64x128xf32>
    %173 = arith.addf %172, %169 : vector<64x128xf32>
    %174 = arith.mulf %171, %173 : vector<64x128xf32>
    %175 = arith.truncf %174 : vector<64x128xf32> to vector<64x128xbf16>
    %c0_65 = arith.constant 0 : index
    %c0_66 = arith.constant 0 : index
    %176 = vector.load %arg13[%c0_65, %c0_66] : memref<128x32xbf16, #tpu.memory_space<vmem>>, vector<128x32xbf16>
    %cst_67 = arith.constant dense<0.000000e+00> : vector<64x32xf32>
    %177 = tpu.matmul %175, %176, %cst_67 {dimension_numbers = #tpu.dot_dimension_numbers<[1], [0], [0], [1], [0, 0, 1, 1], [], []>} : vector<64x128xbf16>, vector<128x32xbf16>, vector<64x32xf32> -> vector<64x32xf32>
    %c0_68 = arith.constant 0 : index
    %c0_69 = arith.constant 0 : index
    %178 = vector.load %arg14[%c0_68, %c0_69] : memref<1x32xf32, #tpu.memory_space<vmem>>, vector<1x32xf32>
    %179 = vector.broadcast %178 : vector<1x32xf32> to vector<64x32xf32>
    %180 = arith.addf %177, %179 : vector<64x32xf32>
    %181 = arith.addf %104, %180 : vector<64x32xf32>
    %c0_70 = arith.constant 0 : index
    %c0_71 = arith.constant 0 : index
    %182 = vector.load %arg15[%c0_70, %c0_71] : memref<64x32xf32, #tpu.memory_space<vmem>>, vector<64x32xf32>
    tpu.vector_store %arg15[%c0_70, %c0_71], %181 {strides = array<i32>} : memref<64x32xf32, #tpu.memory_space<vmem>>, vector<64x32xf32>,
    return
  }
  func.func @transform_0(%arg0: i32) -> (i32, i32) {
    %c0_i32 = arith.constant 0 : i32
    %c0_i32_0 = arith.constant 0 : i32
    return %arg0, %c0_i32 : i32, i32
  }
  func.func @transform_1(%arg0: i32) -> (i32, i32, i32) {
    %c0_i32 = arith.constant 0 : i32
    %c0_i32_0 = arith.constant 0 : i32
    %c0_i32_1 = arith.constant 0 : i32
    %c0_i32_2 = arith.constant 0 : i32
    return %c0_i32, %c0_i32_0, %c0_i32_1 : i32, i32, i32
  }
  func.func @transform_2(%arg0: i32) -> (i32, i32) {
    %c0_i32 = arith.constant 0 : i32
    %c0_i32_0 = arith.constant 0 : i32
    %c0_i32_1 = arith.constant 0 : i32
    return %c0_i32, %c0_i32_0 : i32, i32
  }
  func.func @transform_3(%arg0: i32) -> (i32, i32) {
    %c0_i32 = arith.constant 0 : i32
    %c0_i32_0 = arith.constant 0 : i32
    %c0_i32_1 = arith.constant 0 : i32
    return %c0_i32, %c0_i32_0 : i32, i32
  }
  func.func @transform_4(%arg0: i32) -> (i32, i32) {
    %c0_i32 = arith.constant 0 : i32
    %c0_i32_0 = arith.constant 0 : i32
    %c0_i32_1 = arith.constant 0 : i32
    return %c0_i32, %c0_i32_0 : i32, i32
  }
  func.func @transform_5(%arg0: i32) -> (i32, i32) {
    %c0_i32 = arith.constant 0 : i32
    %c0_i32_0 = arith.constant 0 : i32
    %c0_i32_1 = arith.constant 0 : i32
    return %c0_i32, %c0_i32_0 : i32, i32
  }
  func.func @transform_6(%arg0: i32) -> (i32, i32) {
    %c0_i32 = arith.constant 0 : i32
    %c0_i32_0 = arith.constant 0 : i32
    %c0_i32_1 = arith.constant 0 : i32
    return %c0_i32, %c0_i32_0 : i32, i32
  }
  func.func @transform_7(%arg0: i32) -> (i32, i32) {
    %c0_i32 = arith.constant 0 : i32
    %c0_i32_0 = arith.constant 0 : i32
    %c0_i32_1 = arith.constant 0 : i32
    return %c0_i32, %c0_i32_0 : i32, i32
  }
  func.func @transform_8(%arg0: i32) -> (i32, i32) {
    %c0_i32 = arith.constant 0 : i32
    %c0_i32_0 = arith.constant 0 : i32
    %c0_i32_1 = arith.constant 0 : i32
    return %c0_i32, %c0_i32_0 : i32, i32
  }
  func.func @transform_9(%arg0: i32) -> (i32, i32) {
    %c0_i32 = arith.constant 0 : i32
    %c0_i32_0 = arith.constant 0 : i32
    %c0_i32_1 = arith.constant 0 : i32
    return %c0_i32, %c0_i32_0 : i32, i32
  }
  func.func @transform_10(%arg0: i32) -> (i32, i32) {
    %c0_i32 = arith.constant 0 : i32
    %c0_i32_0 = arith.constant 0 : i32
    %c0_i32_1 = arith.constant 0 : i32
    return %c0_i32, %c0_i32_0 : i32, i32
  }
  func.func @transform_11(%arg0: i32) -> (i32, i32) {
    %c0_i32 = arith.constant 0 : i32
    %c0_i32_0 = arith.constant 0 : i32
    %c0_i32_1 = arith.constant 0 : i32
    return %c0_i32, %c0_i32_0 : i32, i32
  }
  func.func @transform_12(%arg0: i32) -> (i32, i32) {
    %c0_i32 = arith.constant 0 : i32
    %c0_i32_0 = arith.constant 0 : i32
    %c0_i32_1 = arith.constant 0 : i32
    return %c0_i32, %c0_i32_0 : i32, i32
  }
  func.func @transform_13(%arg0: i32) -> (i32, i32) {
    %c0_i32 = arith.constant 0 : i32
    %c0_i32_0 = arith.constant 0 : i32
    %c0_i32_1 = arith.constant 0 : i32
    return %c0_i32, %c0_i32_0 : i32, i32
  }
  func.func @transform_14(%arg0: i32) -> (i32, i32) {
    %c0_i32 = arith.constant 0 : i32
    %c0_i32_0 = arith.constant 0 : i32
    return %arg0, %c0_i32 : i32, i32
  }
}

</mosaic_0001>

<llo_original>
// kernel: basic_layer_forward.2
$region0: #{basic_layer_forward.2}
  #allocation0 [shape = 'u32[]', space=smem, size = 0x4, offset = 0x4, fixed_abs, tag = 'smem constant byte address 0x4 - core index']
  #allocation1 [shape = 'u32[144,128]{1,0:T(1,128)}', space=vmem, size = 0x12000, scoped, tag = 'internal scratch']
  %s0 = inlined_call_operand.vmem [shape: f32[128,32], index: 0, kind: input, shape index: {}]
  %s1 = inlined_call_operand.vmem [shape: f32[2,64,64], index: 1, kind: input, shape index: {}]
  %s2 = inlined_call_operand.vmem [shape: f32[1,32], index: 2, kind: input, shape index: {}]
  %s3 = inlined_call_operand.vmem [shape: f32[1,32], index: 3, kind: input, shape index: {}]
  %s4 = inlined_call_operand.vmem [shape: bf16[32,96], index: 4, kind: input, shape index: {}]
  %s5 = inlined_call_operand.vmem [shape: f32[1,96], index: 5, kind: input, shape index: {}]
  %s6 = inlined_call_operand.vmem [shape: bf16[32,32], index: 6, kind: input, shape index: {}]
  %s7 = inlined_call_operand.vmem [shape: f32[1,32], index: 7, kind: input, shape index: {}]
  %s8 = inlined_call_operand.vmem [shape: f32[1,32], index: 8, kind: input, shape index: {}]
  %s9 = inlined_call_operand.vmem [shape: f32[1,32], index: 9, kind: input, shape index: {}]
  %s10 = inlined_call_operand.vmem [shape: bf16[32,128], index: 10, kind: input, shape index: {}]
  %s11 = inlined_call_operand.vmem [shape: f32[1,128], index: 11, kind: input, shape index: {}]
  %s12 = inlined_call_operand.vmem [shape: bf16[128,32], index: 12, kind: input, shape index: {}]
  %s13 = inlined_call_operand.vmem [shape: f32[1,32], index: 13, kind: input, shape index: {}]
  %s14 = inlined_call_operand.vmem [shape: f32[128,32], index: 14, kind: output, shape index: {}]
  %s15 = sld [smem:[#allocation0]]
  $region89: #{basic_layer_forward.2} parent=0
    _
  %s17 = ssub.s32 1, %s15
  %s18 = scalar_select 0, %s17, %s15
  loop: start=0, step=1, limit=4
  $region2: #{basic_layer_forward.2} parent=0 // loop_pre_header
    _
  $region3: #{basic_layer_forward.2} parent=0 // loop_header
    %s20 = sphi 0, %s24
    %p21 = scmp.ge.s32.totalorder %s20, 4
    %s30 = sphi 0, %s32
    %s33 = sphi 0, %s30
    %s34 = sphi 0, %s33
    %s50 = sphi 0, %s34
    %s54 = sphi 0, %s54
    %s56 = sphi 0, %s54
    %s57 = sphi 0, %s56
    %s71 = sphi 0, %s57
    %s75 = sphi 0, %s75
    %s77 = sphi 0, %s75
    %s78 = sphi 0, %s77
    %s92 = sphi 0, %s78
    %s96 = sphi 0, %s96
    %s98 = sphi 0, %s96
    %s99 = sphi 0, %s98
    %s113 = sphi 0, %s99
    %s117 = sphi 0, %s117
    %s119 = sphi 0, %s117
    %s120 = sphi 0, %s119
    %s134 = sphi 0, %s120
    %s138 = sphi 0, %s138
    %s140 = sphi 0, %s138
    %s141 = sphi 0, %s140
    %s155 = sphi 0, %s141
    %s159 = sphi 0, %s159
    %s161 = sphi 0, %s159
    %s162 = sphi 0, %s161
    %s176 = sphi 0, %s162
    %s180 = sphi 0, %s180
    %s182 = sphi 0, %s180
    %s183 = sphi 0, %s182
    %s197 = sphi 0, %s183
    %s201 = sphi 0, %s201
    %s203 = sphi 0, %s201
    %s204 = sphi 0, %s203
    %s218 = sphi 0, %s204
    %s222 = sphi 0, %s222
    %s224 = sphi 0, %s222
    %s225 = sphi 0, %s224
    %s239 = sphi 0, %s225
    %s243 = sphi 0, %s243
    %s245 = sphi 0, %s243
    %s246 = sphi 0, %s245
    %s260 = sphi 0, %s246
    %s264 = sphi 0, %s264
    %s266 = sphi 0, %s264
    %s267 = sphi 0, %s266
    %s281 = sphi 0, %s267
    %s285 = sphi 0, %s285
    %s287 = sphi 0, %s285
    %s288 = sphi 0, %s287
    %s302 = sphi 0, %s288
    %s306 = sphi 0, %s306
    %s308 = sphi 0, %s306
    %s309 = sphi 0, %s308
    %s323 = sphi 0, %s309
    %s329 = sphi 0, %s331
    %s332 = sphi 0, %s329
    %s333 = sphi 0, %s332
    %s349 = sphi 0, %s333
  $region4: #{basic_layer_forward.2} parent=0 // loop_header_branch
    %23 = sbr.rel (%p21) target = $region8
  $region5: #{basic_layer_forward.2} parent=0 // loop_body
    %s25 = ssub.s32 %s20, 1
    %s26 = ssub.s32 %s20, 2
    %s27 = sadd.s32 %s20, 1
    %s28 = ssub.s32 %s20, %s27
    %p29 = scmp.eq.s32.totalorder %s28, 0
    %s31 = sadd.s32 %s30, 1
    %s32 = scalar_select %p29, %s30, %s31
    %p35 = pneg %p29
    %p36 = scmp.eq.s32.totalorder %s20, 1
    %p37 = por %p35, %p36
    %p38 = scmp.ne.s32.totalorder %s30, %s33
    %p39 = scmp.eq.s32.totalorder %s20, 0
    %p40 = por %p38, %p39
    %p41 = scmp.ne.s32.totalorder %s30, %s33
    %p42 = scmp.eq.s32.totalorder %s25, 1
    %p43 = por %p41, %p42
    %p44 = scmp.ne.s32.totalorder %s33, %s34
    %p45 = scmp.eq.s32.totalorder %s25, 0
    %p46 = por %p44, %p45
    %p47 = scmp.ne.s32.totalorder %s33, %s34
    %p48 = scmp.eq.s32.totalorder %s26, 1
    %p49 = por %p47, %p48
    %p51 = scmp.ne.s32.totalorder %s34, %s50
    %p52 = scmp.eq.s32.totalorder %s26, 0
    %p53 = por %p51, %p52
    %s55 = sadd.s32 %s54, 1
    %p58 = scmp.eq.s32.totalorder %s20, 1
    %p59 = scmp.ne.s32.totalorder %s54, %s56
    %p60 = scmp.eq.s32.totalorder %s20, 0
    %p61 = por %p59, %p60
    %p62 = scmp.ne.s32.totalorder %s54, %s56
    %p63 = scmp.eq.s32.totalorder %s25, 1
    %p64 = por %p62, %p63
    %p65 = scmp.ne.s32.totalorder %s56, %s57
    %p66 = scmp.eq.s32.totalorder %s25, 0
    %p67 = por %p65, %p66
    %p68 = scmp.ne.s32.totalorder %s56, %s57
    %p69 = scmp.eq.s32.totalorder %s26, 1
    %p70 = por %p68, %p69
    %p72 = scmp.ne.s32.totalorder %s57, %s71
    %p73 = scmp.eq.s32.totalorder %s26, 0
    %p74 = por %p72, %p73
    %s76 = sadd.s32 %s75, 1
    %p79 = scmp.eq.s32.totalorder %s20, 1
    %p80 = scmp.ne.s32.totalorder %s75, %s77
    %p81 = scmp.eq.s32.totalorder %s20, 0
    %p82 = por %p80, %p81
    %p83 = scmp.ne.s32.totalorder %s75, %s77
    %p84 = scmp.eq.s32.totalorder %s25, 1
    %p85 = por %p83, %p84
    %p86 = scmp.ne.s32.totalorder %s77, %s78
    %p87 = scmp.eq.s32.totalorder %s25, 0
    %p88 = por %p86, %p87
    %p89 = scmp.ne.s32.totalorder %s77, %s78
    %p90 = scmp.eq.s32.totalorder %s26, 1
    %p91 = por %p89, %p90
    %p93 = scmp.ne.s32.totalorder %s78, %s92
    %p94 = scmp.eq.s32.totalorder %s26, 0
    %p95 = por %p93, %p94
    %s97 = sadd.s32 %s96, 1
    %p100 = scmp.eq.s32.totalorder %s20, 1
    %p101 = scmp.ne.s32.totalorder %s96, %s98
    %p102 = scmp.eq.s32.totalorder %s20, 0
    %p103 = por %p101, %p102
    %p104 = scmp.ne.s32.totalorder %s96, %s98
    %p105 = scmp.eq.s32.totalorder %s25, 1
    %p106 = por %p104, %p105
    %p107 = scmp.ne.s32.totalorder %s98, %s99
    %p108 = scmp.eq.s32.totalorder %s25, 0
    %p109 = por %p107, %p108
    %p110 = scmp.ne.s32.totalorder %s98, %s99
    %p111 = scmp.eq.s32.totalorder %s26, 1
    %p112 = por %p110, %p111
    %p114 = scmp.ne.s32.totalorder %s99, %s113
    %p115 = scmp.eq.s32.totalorder %s26, 0
    %p116 = por %p114, %p115
    %s118 = sadd.s32 %s117, 1
    %p121 = scmp.eq.s32.totalorder %s20, 1
    %p122 = scmp.ne.s32.totalorder %s117, %s119
    %p123 = scmp.eq.s32.totalorder %s20, 0
    %p124 = por %p122, %p123
    %p125 = scmp.ne.s32.totalorder %s117, %s119
    %p126 = scmp.eq.s32.totalorder %s25, 1
    %p127 = por %p125, %p126
    %p128 = scmp.ne.s32.totalorder %s119, %s120
    %p129 = scmp.eq.s32.totalorder %s25, 0
    %p130 = por %p128, %p129
    %p131 = scmp.ne.s32.totalorder %s119, %s120
    %p132 = scmp.eq.s32.totalorder %s26, 1
    %p133 = por %p131, %p132
    %p135 = scmp.ne.s32.totalorder %s120, %s134
    %p136 = scmp.eq.s32.totalorder %s26, 0
    %p137 = por %p135, %p136
    %s139 = sadd.s32 %s138, 1
    %p142 = scmp.eq.s32.totalorder %s20, 1
    %p143 = scmp.ne.s32.totalorder %s138, %s140
    %p144 = scmp.eq.s32.totalorder %s20, 0
    %p145 = por %p143, %p144
    %p146 = scmp.ne.s32.totalorder %s138, %s140
    %p147 = scmp.eq.s32.totalorder %s25, 1
    %p148 = por %p146, %p147
    %p149 = scmp.ne.s32.totalorder %s140, %s141
    %p150 = scmp.eq.s32.totalorder %s25, 0
    %p151 = por %p149, %p150
    %p152 = scmp.ne.s32.totalorder %s140, %s141
    %p153 = scmp.eq.s32.totalorder %s26, 1
    %p154 = por %p152, %p153
    %p156 = scmp.ne.s32.totalorder %s141, %s155
    %p157 = scmp.eq.s32.totalorder %s26, 0
    %p158 = por %p156, %p157
    %s160 = sadd.s32 %s159, 1
    %p163 = scmp.eq.s32.totalorder %s20, 1
    %p164 = scmp.ne.s32.totalorder %s159, %s161
    %p165 = scmp.eq.s32.totalorder %s20, 0
    %p166 = por %p164, %p165
    %p167 = scmp.ne.s32.totalorder %s159, %s161
    %p168 = scmp.eq.s32.totalorder %s25, 1
    %p169 = por %p167, %p168
    %p170 = scmp.ne.s32.totalorder %s161, %s162
    %p171 = scmp.eq.s32.totalorder %s25, 0
    %p172 = por %p170, %p171
    %p173 = scmp.ne.s32.totalorder %s161, %s162
    %p174 = scmp.eq.s32.totalorder %s26, 1
    %p175 = por %p173, %p174
    %p177 = scmp.ne.s32.totalorder %s162, %s176
    %p178 = scmp.eq.s32.totalorder %s26, 0
    %p179 = por %p177, %p178
    %s181 = sadd.s32 %s180, 1
    %p184 = scmp.eq.s32.totalorder %s20, 1
    %p185 = scmp.ne.s32.totalorder %s180, %s182
    %p186 = scmp.eq.s32.totalorder %s20, 0
    %p187 = por %p185, %p186
    %p188 = scmp.ne.s32.totalorder %s180, %s182
    %p189 = scmp.eq.s32.totalorder %s25, 1
    %p190 = por %p188, %p189
    %p191 = scmp.ne.s32.totalorder %s182, %s183
    %p192 = scmp.eq.s32.totalorder %s25, 0
    %p193 = por %p191, %p192
    %p194 = scmp.ne.s32.totalorder %s182, %s183
    %p195 = scmp.eq.s32.totalorder %s26, 1
    %p196 = por %p194, %p195
    %p198 = scmp.ne.s32.totalorder %s183, %s197
    %p199 = scmp.eq.s32.totalorder %s26, 0
    %p200 = por %p198, %p199
    %s202 = sadd.s32 %s201, 1
    %p205 = scmp.eq.s32.totalorder %s20, 1
    %p206 = scmp.ne.s32.totalorder %s201, %s203
    %p207 = scmp.eq.s32.totalorder %s20, 0
    %p208 = por %p206, %p207
    %p209 = scmp.ne.s32.totalorder %s201, %s203
    %p210 = scmp.eq.s32.totalorder %s25, 1
    %p211 = por %p209, %p210
    %p212 = scmp.ne.s32.totalorder %s203, %s204
    %p213 = scmp.eq.s32.totalorder %s25, 0
    %p214 = por %p212, %p213
    %p215 = scmp.ne.s32.totalorder %s203, %s204
    %p216 = scmp.eq.s32.totalorder %s26, 1
    %p217 = por %p215, %p216
    %p219 = scmp.ne.s32.totalorder %s204, %s218
    %p220 = scmp.eq.s32.totalorder %s26, 0
    %p221 = por %p219, %p220
    %s223 = sadd.s32 %s222, 1
    %p226 = scmp.eq.s32.totalorder %s20, 1
    %p227 = scmp.ne.s32.totalorder %s222, %s224
    %p228 = scmp.eq.s32.totalorder %s20, 0
    %p229 = por %p227, %p228
    %p230 = scmp.ne.s32.totalorder %s222, %s224
    %p231 = scmp.eq.s32.totalorder %s25, 1
    %p232 = por %p230, %p231
    %p233 = scmp.ne.s32.totalorder %s224, %s225
    %p234 = scmp.eq.s32.totalorder %s25, 0
    %p235 = por %p233, %p234
    %p236 = scmp.ne.s32.totalorder %s224, %s225
    %p237 = scmp.eq.s32.totalorder %s26, 1
    %p238 = por %p236, %p237
    %p240 = scmp.ne.s32.totalorder %s225, %s239
    %p241 = scmp.eq.s32.totalorder %s26, 0
    %p242 = por %p240, %p241
    %s244 = sadd.s32 %s243, 1
    %p247 = scmp.eq.s32.totalorder %s20, 1
    %p248 = scmp.ne.s32.totalorder %s243, %s245
    %p249 = scmp.eq.s32.totalorder %s20, 0
    %p250 = por %p248, %p249
    %p251 = scmp.ne.s32.totalorder %s243, %s245
    %p252 = scmp.eq.s32.totalorder %s25, 1
    %p253 = por %p251, %p252
    %p254 = scmp.ne.s32.totalorder %s245, %s246
    %p255 = scmp.eq.s32.totalorder %s25, 0
    %p256 = por %p254, %p255
    %p257 = scmp.ne.s32.totalorder %s245, %s246
    %p258 = scmp.eq.s32.totalorder %s26, 1
    %p259 = por %p257, %p258
    %p261 = scmp.ne.s32.totalorder %s246, %s260
    %p262 = scmp.eq.s32.totalorder %s26, 0
    %p263 = por %p261, %p262
    %s265 = sadd.s32 %s264, 1
    %p268 = scmp.eq.s32.totalorder %s20, 1
    %p269 = scmp.ne.s32.totalorder %s264, %s266
    %p270 = scmp.eq.s32.totalorder %s20, 0
    %p271 = por %p269, %p270
    %p272 = scmp.ne.s32.totalorder %s264, %s266
    %p273 = scmp.eq.s32.totalorder %s25, 1
    %p274 = por %p272, %p273
    %p275 = scmp.ne.s32.totalorder %s266, %s267
    %p276 = scmp.eq.s32.totalorder %s25, 0
    %p277 = por %p275, %p276
    %p278 = scmp.ne.s32.totalorder %s266, %s267
    %p279 = scmp.eq.s32.totalorder %s26, 1
    %p280 = por %p278, %p279
    %p282 = scmp.ne.s32.totalorder %s267, %s281
    %p283 = scmp.eq.s32.totalorder %s26, 0
    %p284 = por %p282, %p283
    %s286 = sadd.s32 %s285, 1
    %p289 = scmp.eq.s32.totalorder %s20, 1
    %p290 = scmp.ne.s32.totalorder %s285, %s287
    %p291 = scmp.eq.s32.totalorder %s20, 0
    %p292 = por %p290, %p291
    %p293 = scmp.ne.s32.totalorder %s285, %s287
    %p294 = scmp.eq.s32.totalorder %s25, 1
    %p295 = por %p293, %p294
    %p296 = scmp.ne.s32.totalorder %s287, %s288
    %p297 = scmp.eq.s32.totalorder %s25, 0
    %p298 = por %p296, %p297
    %p299 = scmp.ne.s32.totalorder %s287, %s288
    %p300 = scmp.eq.s32.totalorder %s26, 1
    %p301 = por %p299, %p300
    %p303 = scmp.ne.s32.totalorder %s288, %s302
    %p304 = scmp.eq.s32.totalorder %s26, 0
    %p305 = por %p303, %p304
    %s307 = sadd.s32 %s306, 1
    %p310 = scmp.eq.s32.totalorder %s20, 1
    %p311 = scmp.ne.s32.totalorder %s306, %s308
    %p312 = scmp.eq.s32.totalorder %s20, 0
    %p313 = por %p311, %p312
    %p314 = scmp.ne.s32.totalorder %s306, %s308
    %p315 = scmp.eq.s32.totalorder %s25, 1
    %p316 = por %p314, %p315
    %p317 = scmp.ne.s32.totalorder %s308, %s309
    %p318 = scmp.eq.s32.totalorder %s25, 0
    %p319 = por %p317, %p318
    %p320 = scmp.ne.s32.totalorder %s308, %s309
    %p321 = scmp.eq.s32.totalorder %s26, 1
    %p322 = por %p320, %p321
    %p324 = scmp.ne.s32.totalorder %s309, %s323
    %p325 = scmp.eq.s32.totalorder %s26, 0
    %p326 = por %p324, %p325
    %s327 = ssub.s32 %s20, %s27
    %p328 = scmp.eq.s32.totalorder %s327, 0
    %s330 = sadd.s32 %s329, 1
    %s331 = scalar_select %p328, %s329, %s330
    %p334 = pneg %p328
    %p335 = scmp.eq.s32.totalorder %s20, 1
    %p336 = por %p334, %p335
    %p337 = scmp.ne.s32.totalorder %s329, %s332
    %p338 = scmp.eq.s32.totalorder %s20, 0
    %p339 = por %p337, %p338
    %p340 = scmp.ne.s32.totalorder %s329, %s332
    %p341 = scmp.eq.s32.totalorder %s25, 1
    %p342 = por %p340, %p341
    %p343 = scmp.ne.s32.totalorder %s332, %s333
    %p344 = scmp.eq.s32.totalorder %s25, 0
    %p345 = por %p343, %p344
    %p346 = scmp.ne.s32.totalorder %s332, %s333
    %p347 = scmp.eq.s32.totalorder %s26, 1
    %p348 = por %p346, %p347
    %p350 = scmp.ne.s32.totalorder %s333, %s349
    %p351 = scmp.eq.s32.totalorder %s26, 0
    %p352 = por %p350, %p351
    %p353 = scmp.le.s32.totalorder 1, %s20
    %p354 = scmp.lt.s32.totalorder %s20, 3
    %p355 = pnand %p353, %p354
    %p356 = pneg %p355
    // Predicated region
    $region9: #{basic_layer_forward.2} parent=5 // pred_check
      _
    $region10: #{basic_layer_forward.2} parent=5 // pred_check_branch
      %358 = sbr.rel (%p355) target = $region12
    $region11: #{basic_layer_forward.2} parent=5 // pred_region
      %s359 = ssub.s32 %s20, 1
      // Predicated region
      $region13: #{basic_layer_forward.2} parent=11 // pred_check
        %p360 = pneg %p67
      $region14: #{basic_layer_forward.2} parent=11 // pred_check_branch
        %362 = sbr.rel (%p360) target = $region16
      $region15: #{basic_layer_forward.2} parent=11 // pred_region
        _
      $region16: #{basic_layer_forward.2} parent=11 // pred_fallthru
        _
      // Predicated region
      $region17: #{basic_layer_forward.2} parent=11 // pred_check
        %p363 = pneg %p88
      $region18: #{basic_layer_forward.2} parent=11 // pred_check_branch
        %365 = sbr.rel (%p363) target = $region20
      $region19: #{basic_layer_forward.2} parent=11 // pred_region
        _
      $region20: #{basic_layer_forward.2} parent=11 // pred_fallthru
        _
      // Predicated region
      $region21: #{basic_layer_forward.2} parent=11 // pred_check
        %p366 = pneg %p109
      $region22: #{basic_layer_forward.2} parent=11 // pred_check_branch
        %368 = sbr.rel (%p366) target = $region24
      $region23: #{basic_layer_forward.2} parent=11 // pred_region
        _
      $region24: #{basic_layer_forward.2} parent=11 // pred_fallthru
        _
      // Predicated region
      $region25: #{basic_layer_forward.2} parent=11 // pred_check
        %p369 = pneg %p130
      $region26: #{basic_layer_forward.2} parent=11 // pred_check_branch
        %371 = sbr.rel (%p369) target = $region28
      $region27: #{basic_layer_forward.2} parent=11 // pred_region
        _
      $region28: #{basic_layer_forward.2} parent=11 // pred_fallthru
        _
      // Predicated region
      $region29: #{basic_layer_forward.2} parent=11 // pred_check
        %p372 = pneg %p151
      $region30: #{basic_layer_forward.2} parent=11 // pred_check_branch
        %374 = sbr.rel (%p372) target = $region32
      $region31: #{basic_layer_forward.2} parent=11 // pred_region
        _
      $region32: #{basic_layer_forward.2} parent=11 // pred_fallthru
        _
      // Predicated region
      $region33: #{basic_layer_forward.2} parent=11 // pred_check
        %p375 = pneg %p172
      $region34: #{basic_layer_forward.2} parent=11 // pred_check_branch
        %377 = sbr.rel (%p375) target = $region36
      $region35: #{basic_layer_forward.2} parent=11 // pred_region
        _
      $region36: #{basic_layer_forward.2} parent=11 // pred_fallthru
        _
      // Predicated region
      $region37: #{basic_layer_forward.2} parent=11 // pred_check
        %p378 = pneg %p193
      $region38: #{basic_layer_forward.2} parent=11 // pred_check_branch
        %380 = sbr.rel (%p378) target = $region40
      $region39: #{basic_layer_forward.2} parent=11 // pred_region
        _
      $region40: #{basic_layer_forward.2} parent=11 // pred_fallthru
        _
      // Predicated region
      $region41: #{basic_layer_forward.2} parent=11 // pred_check
        %p381 = pneg %p214
      $region42: #{basic_layer_forward.2} parent=11 // pred_check_branch
        %383 = sbr.rel (%p381) target = $region44
      $region43: #{basic_layer_forward.2} parent=11 // pred_region
        _
      $region44: #{basic_layer_forward.2} parent=11 // pred_fallthru
        _
      // Predicated region
      $region45: #{basic_layer_forward.2} parent=11 // pred_check
        %p384 = pneg %p235
      $region46: #{basic_layer_forward.2} parent=11 // pred_check_branch
        %386 = sbr.rel (%p384) target = $region48
      $region47: #{basic_layer_forward.2} parent=11 // pred_region
        _
      $region48: #{basic_layer_forward.2} parent=11 // pred_fallthru
        _
      // Predicated region
      $region49: #{basic_layer_forward.2} parent=11 // pred_check
        %p387 = pneg %p256
      $region50: #{basic_layer_forward.2} parent=11 // pred_check_branch
        %389 = sbr.rel (%p387) target = $region52
      $region51: #{basic_layer_forward.2} parent=11 // pred_region
        _
      $region52: #{basic_layer_forward.2} parent=11 // pred_fallthru
        _
      // Predicated region
      $region53: #{basic_layer_forward.2} parent=11 // pred_check
        %p390 = pneg %p277
      $region54: #{basic_layer_forward.2} parent=11 // pred_check_branch
        %392 = sbr.rel (%p390) target = $region56
      $region55: #{basic_layer_forward.2} parent=11 // pred_region
        _
      $region56: #{basic_layer_forward.2} parent=11 // pred_fallthru
        _
      // Predicated region
      $region57: #{basic_layer_forward.2} parent=11 // pred_check
        %p393 = pneg %p298
      $region58: #{basic_layer_forward.2} parent=11 // pred_check_branch
        %395 = sbr.rel (%p393) target = $region60
      $region59: #{basic_layer_forward.2} parent=11 // pred_region
        _
      $region60: #{basic_layer_forward.2} parent=11 // pred_fallthru
        _
      // Predicated region
      $region61: #{basic_layer_forward.2} parent=11 // pred_check
        %p396 = pneg %p319
      $region62: #{basic_layer_forward.2} parent=11 // pred_check_branch
        %398 = sbr.rel (%p396) target = $region64
      $region63: #{basic_layer_forward.2} parent=11 // pred_region
        _
      $region64: #{basic_layer_forward.2} parent=11 // pred_fallthru
        _
    $region12: #{basic_layer_forward.2} parent=5 // pred_fallthru
      _
    %p399 = scmp.lt.s32.totalorder %s20, 2
    // Predicated region
    $region65: #{basic_layer_forward.2} parent=5 // pred_check
      %p400 = pneg %p399
    $region66: #{basic_layer_forward.2} parent=5 // pred_check_branch
      %402 = sbr.rel (%p400) target = $region68
    $region67: #{basic_layer_forward.2} parent=5 // pred_region
      // Predicated region
      $region69: #{basic_layer_forward.2} parent=67 // pred_check
        %p403 = pneg %p40
      $region70: #{basic_layer_forward.2} parent=67 // pred_check_branch
        %405 = sbr.rel (%p403) target = $region72
      $region71: #{basic_layer_forward.2} parent=67 // pred_region
        %s406 = smul.u32 8, %s20
        %p407 = scmp.lt.s32.totalorder %s406, 15
        %s408 = scalar_select %p407, %s406, 15
        %s409 = smul.addr %s408, 8
        %s410 = scalar_lea.vmem %s0, %s409
        %s411 = smul.u32 8, %s20
      $region72: #{basic_layer_forward.2} parent=67 // pred_fallthru
        _
    $region68: #{basic_layer_forward.2} parent=5 // pred_fallthru
      _
    %p412 = scmp.le.s32.totalorder 1, %s20
    %p413 = scmp.lt.s32.totalorder %s20, 3
    %p414 = pnand %p412, %p413
    %p415 = pneg %p414
    // Predicated region
    $region73: #{basic_layer_forward.2} parent=5 // pred_check
      _
    $region74: #{basic_layer_forward.2} parent=5 // pred_check_branch
      %417 = sbr.rel (%p414) target = $region76
    $region75: #{basic_layer_forward.2} parent=5 // pred_region
      %s418 = ssub.s32 %s20, 1
      %s419 = smul.u32 8, %s25
      %p420 = scmp.lt.s32.totalorder %s419, 15
      %s421 = scalar_select %p420, %s419, 15
      %s422 = smul.addr %s421, 8
      %s423 = scalar_lea.vmem %s0, %s422
      %p424 = pneg %p46
      %p425 = pneg %p43
      %p426 = pneg %p67
      %p427 = pneg %p64
      %p428 = pneg %p88
      %p429 = pneg %p85
      %p430 = pneg %p109
      %p431 = pneg %p106
      %p432 = pneg %p130
      %p433 = pneg %p127
      %p434 = pneg %p151
      %p435 = pneg %p148
      %p436 = pneg %p172
      %p437 = pneg %p169
      %p438 = pneg %p193
      %p439 = pneg %p190
      %p440 = pneg %p214
      %p441 = pneg %p211
      %p442 = pneg %p235
      %p443 = pneg %p232
      %p444 = pneg %p256
      %p445 = pneg %p253
      %p446 = pneg %p277
      %p447 = pneg %p274
      %p448 = pneg %p298
      %p449 = pneg %p295
      %p450 = pneg %p319
      %p451 = pneg %p316
      %p452 = pneg %p345
      %p453 = pneg %p342
      %s454 = smul.u32 8, %s25
      %p455 = scmp.lt.s32.totalorder %s454, 15
      %s456 = scalar_select %p455, %s454, 15
      %s457 = smul.addr %s456, 8
      %s458 = scalar_lea.vmem %s14, %s457
      %s459 = smul.u32 8, %s25
      %p460 = scmp.lt.s32.totalorder %s459, 15
      %s461 = scalar_select %p460, %s459, 15
      %s462 = smul.addr %s461, 8
      %s463 = scalar_lea.vmem %s0, %s462
      %s464 = smul.u32 8, %s25
      %s465 = smul.u32 8, %s25
      %p466 = scmp.lt.s32.totalorder %s465, 15
      %s467 = scalar_select %p466, %s465, 15
      %s468 = smul.addr %s467, 8
      %s469 = scalar_lea.vmem %s14, %s468
      %s470 = smul.u32 8, %s25
      %v472 = vld [vmem:[%s463] sm:$0xff]
      %v473 = vld [vmem:[%s463 + $0x8] sm:$0xff]
      %v474 = vld [vmem:[%s463 + $0x10] sm:$0xff]
      %v475 = vld [vmem:[%s463 + $0x18] sm:$0xff]
      %v476 = vld [vmem:[%s463 + $0x20] sm:$0xff]
      %v477 = vld [vmem:[%s463 + $0x28] sm:$0xff]
      %v478 = vld [vmem:[%s463 + $0x30] sm:$0xff]
      %v479 = vld [vmem:[%s463 + $0x38] sm:$0xff]
      %v480 = vld [vmem:[%s2] sm:$0x1]
      %v481 = vld [vmem:[%s3] sm:$0x1]
      %vm482 = vcmask 261120
      %v483 = vsel %vm482, %v472, 0.0
      %484 = vadd.xlane.f32.xlu0 %v483
      %v485 = vpop.xlane.xlu0 %484
      %v486 = vsel %vm482, %v473, 0.0
      %487 = vadd.xlane.f32.xlu0 %v486
      %v488 = vpop.xlane.xlu0 %487
      %v489 = vsel %vm482, %v474, 0.0
      %490 = vadd.xlane.f32.xlu0 %v489
      %v491 = vpop.xlane.xlu0 %490
      %v492 = vsel %vm482, %v475, 0.0
      %493 = vadd.xlane.f32.xlu0 %v492
      %v494 = vpop.xlane.xlu0 %493
      %v495 = vsel %vm482, %v476, 0.0
      %496 = vadd.xlane.f32.xlu0 %v495
      %v497 = vpop.xlane.xlu0 %496
      %v498 = vsel %vm482, %v477, 0.0
      %499 = vadd.xlane.f32.xlu0 %v498
      %v500 = vpop.xlane.xlu0 %499
      %v501 = vsel %vm482, %v478, 0.0
      %502 = vadd.xlane.f32.xlu0 %v501
      %v503 = vpop.xlane.xlu0 %502
      %v504 = vsel %vm482, %v479, 0.0
      %505 = vadd.xlane.f32.xlu0 %v504
      %v506 = vpop.xlane.xlu0 %505
      %v507 = vrcp.pop 32.0
      %v508 = vmul.f32 %v485, %v507
      %v509 = vmul.f32 %v488, %v507
      %v510 = vmul.f32 %v491, %v507
      %v511 = vmul.f32 %v494, %v507
      %v512 = vmul.f32 %v497, %v507
      %v513 = vmul.f32 %v500, %v507
      %v514 = vmul.f32 %v503, %v507
      %v515 = vmul.f32 %v506, %v507
      %v516 = vsub.f32 %v472, %v508
      %v517 = vsub.f32 %v473, %v509
      %v518 = vsub.f32 %v474, %v510
      %v519 = vsub.f32 %v475, %v511
      %v520 = vsub.f32 %v476, %v512
      %v521 = vsub.f32 %v477, %v513
      %v522 = vsub.f32 %v478, %v514
      %v523 = vsub.f32 %v479, %v515
      %v524 = vmul.f32 %v516, %v516
      %v525 = vmul.f32 %v517, %v517
      %v526 = vmul.f32 %v518, %v518
      %v527 = vmul.f32 %v519, %v519
      %v528 = vmul.f32 %v520, %v520
      %v529 = vmul.f32 %v521, %v521
      %v530 = vmul.f32 %v522, %v522
      %v531 = vmul.f32 %v523, %v523
      %v532 = vsel %vm482, %v524, 0.0
      %533 = vadd.xlane.f32.xlu0 %v532
      %v534 = vpop.xlane.xlu0 %533
      %v535 = vsel %vm482, %v525, 0.0
      %536 = vadd.xlane.f32.xlu0 %v535
      %v537 = vpop.xlane.xlu0 %536
      %v538 = vsel %vm482, %v526, 0.0
      %539 = vadd.xlane.f32.xlu0 %v538
      %v540 = vpop.xlane.xlu0 %539
      %v541 = vsel %vm482, %v527, 0.0
      %542 = vadd.xlane.f32.xlu0 %v541
      %v543 = vpop.xlane.xlu0 %542
      %v544 = vsel %vm482, %v528, 0.0
      %545 = vadd.xlane.f32.xlu0 %v544
      %v546 = vpop.xlane.xlu0 %545
      %v547 = vsel %vm482, %v529, 0.0
      %548 = vadd.xlane.f32.xlu0 %v547
      %v549 = vpop.xlane.xlu0 %548
      %v550 = vsel %vm482, %v530, 0.0
      %551 = vadd.xlane.f32.xlu0 %v550
      %v552 = vpop.xlane.xlu0 %551
      %v553 = vsel %vm482, %v531, 0.0
      %554 = vadd.xlane.f32.xlu0 %v553
      %v555 = vpop.xlane.xlu0 %554
      %v556 = vmul.f32 %v534, %v507
      %v557 = vmul.f32 %v537, %v507
      %v558 = vmul.f32 %v540, %v507
      %v559 = vmul.f32 %v543, %v507
      %v560 = vmul.f32 %v546, %v507
      %v561 = vmul.f32 %v549, %v507
      %v562 = vmul.f32 %v552, %v507
      %v563 = vmul.f32 %v555, %v507
      %v564 = vadd.f32 %v556, 1e-05
      %v565 = vadd.f32 %v557, 1e-05
      %v566 = vadd.f32 %v558, 1e-05
      %v567 = vadd.f32 %v559, 1e-05
      %v568 = vadd.f32 %v560, 1e-05
      %v569 = vadd.f32 %v561, 1e-05
      %v570 = vadd.f32 %v562, 1e-05
      %v571 = vadd.f32 %v563, 1e-05
      %v572 = vrsqrt.pop %v564
      %v573 = vrsqrt.pop %v565
      %v574 = vrsqrt.pop %v566
      %v575 = vrsqrt.pop %v567
      %v576 = vrsqrt.pop %v568
      %v577 = vrsqrt.pop %v569
      %v578 = vrsqrt.pop %v570
      %v579 = vrsqrt.pop %v571
      %v580 = vmul.f32 %v516, %v572
      %v581 = vmul.f32 %v517, %v573
      %v582 = vmul.f32 %v518, %v574
      %v583 = vmul.f32 %v519, %v575
      %v584 = vmul.f32 %v520, %v576
      %v585 = vmul.f32 %v521, %v577
      %v586 = vmul.f32 %v522, %v578
      %v587 = vmul.f32 %v523, %v579
      %v589 = vlaneseq
      %v590 = vshrl.u32 %v589, 7
      %v591 = vsub.s32 0, %v590
      %v592 = vrot.slane %v480, %v591
      %v594 = vmul.f32 %v580, %v592
      %v595 = vmul.f32 %v581, %v592
      %v596 = vmul.f32 %v582, %v592
      %v597 = vmul.f32 %v583, %v592
      %v598 = vmul.f32 %v584, %v592
      %v599 = vmul.f32 %v585, %v592
      %v600 = vmul.f32 %v586, %v592
      %v601 = vmul.f32 %v587, %v592
      %v603 = vlaneseq
      %v604 = vshrl.u32 %v603, 7
      %v605 = vsub.s32 0, %v604
      %v606 = vrot.slane %v481, %v605
      %v608 = vadd.f32 %v594, %v606
      %v609 = vadd.f32 %v595, %v606
      %v610 = vadd.f32 %v596, %v606
      %v611 = vadd.f32 %v597, %v606
      %v612 = vadd.f32 %v598, %v606
      %v613 = vadd.f32 %v599, %v606
      %v614 = vadd.f32 %v600, %v606
      %v615 = vadd.f32 %v601, %v606
      %v616 = vpack.c.bf16 %v609, %v608
      %v617 = vpack.c.bf16 %v611, %v610
      %v618 = vpack.c.bf16 %v613, %v612
      %v619 = vpack.c.bf16 %v615, %v614
      %v620 = vld [vmem:[%s4] sm:$0xf]
      %v621 = vld [vmem:[%s4 + $0x4] sm:$0xf]
      %v622 = vld [vmem:[%s4 + $0x8] sm:$0xf]
      %v623 = vld [vmem:[%s4 + $0xc] sm:$0xf]
      %v624 = vld [vmem:[%s5] sm:$0x1]
      %v626 = vlaneseq
      %v627 = vshrl.u32 %v626, 7
      %v628 = vsub.s32 0, %v627
      %v629 = vrot.slane %v624, %v628
      %v635 = vunpack.c.l.b16 %v620
      %v636 = vunpack.c.l.b16 %v621
      %v637 = vunpack.c.l.b16 %v622
      %v638 = vunpack.c.l.b16 %v623
      %v639 = vpack.c.b16 %v636, %v635
      %v640 = vpack.c.b16 %v638, %v637
      %v644 = vsel %vm482, %v616, 0
      %v647 = vsel %vm482, %v617, 0
      %v650 = vsel %vm482, %v618, 0
      %v653 = vsel %vm482, %v619, 0
      %655 = vmatprep.subr.bf16.mxu0 0
      %656 = vmatpush1.bf16.msra.mxu0 %v639
      %657 = vmatprep.subr.bf16.mxu0 0
      %658 = vmatpush1.bf16.msra.mxu0 %v640
      %659 = vmatprep.subr.bf16.mxu0 0
      %660 = vmatpush1.bf16.msra.mxu0 0
      %661 = vmatprep.subr.bf16.mxu0 0
      %662 = vmatpush1.bf16.msra.mxu0 0
      %663 = vmatprep.subr.bf16.mxu0 0
      %664 = vmatpush1.bf16.msra.mxu0 0
      %665 = vmatprep.subr.bf16.mxu0 0
      %666 = vmatpush1.bf16.msra.mxu0 0
      %667 = vmatprep.subr.bf16.mxu0 0
      %668 = vmatpush1.bf16.msra.mxu0 0
      %669 = vmatprep.subr.bf16.mxu0 0
      %670 = vmatpush1.bf16.msra.mxu0 0
      %671 = vmatprep.subr.bf16.mxu0 0
      %672 = vmatpush1.bf16.msra.mxu0 0
      %673 = vmatprep.subr.bf16.mxu0 0
      %674 = vmatpush1.bf16.msra.mxu0 0
      %675 = vmatprep.subr.bf16.mxu0 0
      %676 = vmatpush1.bf16.msra.mxu0 0
      %677 = vmatprep.subr.bf16.mxu0 0
      %678 = vmatpush1.bf16.msra.mxu0 0
      %679 = vmatprep.subr.bf16.mxu0 0
      %680 = vmatpush1.bf16.msra.mxu0 0
      %681 = vmatprep.subr.bf16.mxu0 0
      %682 = vmatpush1.bf16.msra.mxu0 0
      %683 = vmatprep.subr.bf16.mxu0 0
      %684 = vmatpush1.bf16.msra.mxu0 0
      %685 = vmatprep.subr.bf16.mxu0 0
      %686 = vmatpush1.bf16.msra.mxu0 0
      %687 = vmatprep.mubr.bf16.mxu0 0
      %688 = vmatmul.mubr.bf16.gmra.mrb[0].mxu0 %v644
      %v689 = vpop.f32.mrb[0].mxu0
      %v690 = vadd.f32 %v629, %v689
      %v691 = vpop.f32.mrb[0].mxu0
      %v692 = vpop.f32.mrb[0].mxu0
      %v693 = vadd.f32 %v629, %v692
      %v694 = vpop.f32.mrb[0].mxu0
      %695 = vmatprep.mubr.bf16.mxu0 0
      %696 = vmatmul.mubr.bf16.gmra.mrb[0].mxu0 %v647
      %v697 = vpop.f32.mrb[0].mxu0
      %v698 = vadd.f32 %v629, %v697
      %v699 = vpop.f32.mrb[0].mxu0
      %v700 = vpop.f32.mrb[0].mxu0
      %v701 = vadd.f32 %v629, %v700
      %v702 = vpop.f32.mrb[0].mxu0
      %703 = vmatprep.mubr.bf16.mxu0 0
      %704 = vmatmul.mubr.bf16.gmra.mrb[0].mxu0 %v650
      %v705 = vpop.f32.mrb[0].mxu0
      %v706 = vadd.f32 %v629, %v705
      %v707 = vpop.f32.mrb[0].mxu0
      %v708 = vpop.f32.mrb[0].mxu0
      %v709 = vadd.f32 %v629, %v708
      %v710 = vpop.f32.mrb[0].mxu0
      %711 = vmatprep.mubr.bf16.mxu0 0
      %712 = vmatmul.mubr.bf16.gmra.mrb[0].mxu0 %v653
      %v713 = vpop.f32.mrb[0].mxu0
      %v714 = vadd.f32 %v629, %v713
      %v715 = vpop.f32.mrb[0].mxu0
      %v716 = vpop.f32.mrb[0].mxu0
      %v717 = vadd.f32 %v629, %v716
      %v718 = vpop.f32.mrb[0].mxu0
      %719 = vdwg.mxu0
      %v720 = vlaneseq
      %v721 = vand.u32 %v720, 127
      %v722 = vpack.c.bf16 %v693, %v690
      %v723 = vpack.c.bf16 %v701, %v698
      %v724 = vpack.c.bf16 %v709, %v706
      %v725 = vpack.c.bf16 %v717, %v714
      %v726 = vld [vmem:[%s1] sm:$0xff]
      %v727 = vld [vmem:[%s1 + $0x8] sm:$0xff]
      %v728 = vld [vmem:[%s1 + $0x10] sm:$0xff]
      %v729 = vld [vmem:[%s1 + $0x18] sm:$0xff]
      %v730 = vld [vmem:[%s1 + $0x20] sm:$0xff]
      %v731 = vld [vmem:[%s1 + $0x28] sm:$0xff]
      %v732 = vld [vmem:[%s1 + $0x30] sm:$0xff]
      %v733 = vld [vmem:[%s1 + $0x38] sm:$0xff]
      %738 = vrot.lane.b32.xlu0 %v722, 96
      %v739 = vpop.permute.xlu0 %738
      %740 = vrot.lane.b32.xlu0 %v723, 96
      %v741 = vpop.permute.xlu0 %740
      %742 = vrot.lane.b32.xlu0 %v724, 96
      %v743 = vpop.permute.xlu0 %742
      %744 = vrot.lane.b32.xlu0 %v725, 96
      %v745 = vpop.permute.xlu0 %744
      %vm746 = vcmask 130048
      %v748 = vsel %vm746, %v722, 0
      %v751 = vsel %vm746, %v723, 0
      %v754 = vsel %vm746, %v724, 0
      %v757 = vsel %vm746, %v725, 0
      %v760 = vsel %vm746, %v739, 0
      %v763 = vsel %vm746, %v741, 0
      %v766 = vsel %vm746, %v743, 0
      %v769 = vsel %vm746, %v745, 0
      %771 = vmatprep.subr.bf16.mxu0 0
      %772 = vmatpush1.bf16.xpose.msra.mxu0 %v760
      %773 = vmatprep.subr.bf16.mxu0 0
      %774 = vmatpush1.bf16.xpose.msra.mxu0 %v763
      %775 = vmatprep.subr.bf16.mxu0 0
      %776 = vmatpush1.bf16.xpose.msra.mxu0 %v766
      %777 = vmatprep.subr.bf16.mxu0 0
      %778 = vmatpush1.bf16.xpose.msra.mxu0 %v769
      %779 = vmatprep.subr.bf16.mxu0 0
      %780 = vmatpush1.bf16.xpose.msra.mxu0 0
      %781 = vmatprep.subr.bf16.mxu0 0
      %782 = vmatpush1.bf16.xpose.msra.mxu0 0
      %783 = vmatprep.subr.bf16.mxu0 0
      %784 = vmatpush1.bf16.xpose.msra.mxu0 0
      %785 = vmatprep.subr.bf16.mxu0 0
      %786 = vmatpush1.bf16.xpose.msra.mxu0 0
      %787 = vmatprep.subr.bf16.mxu0 0
      %788 = vmatpush1.bf16.xpose.msra.mxu0 0
      %789 = vmatprep.subr.bf16.mxu0 0
      %790 = vmatpush1.bf16.xpose.msra.mxu0 0
      %791 = vmatprep.subr.bf16.mxu0 0
      %792 = vmatpush1.bf16.xpose.msra.mxu0 0
      %793 = vmatprep.subr.bf16.mxu0 0
      %794 = vmatpush1.bf16.xpose.msra.mxu0 0
      %795 = vmatprep.subr.bf16.mxu0 0
      %796 = vmatpush1.bf16.xpose.msra.mxu0 0
      %797 = vmatprep.subr.bf16.mxu0 0
      %798 = vmatpush1.bf16.xpose.msra.mxu0 0
      %799 = vmatprep.subr.bf16.mxu0 0
      %800 = vmatpush1.bf16.xpose.msra.mxu0 0
      %801 = vmatprep.subr.bf16.mxu0 0
      %802 = vmatpush1.bf16.xpose.msra.mxu0 0
      %803 = vmatprep.mubr.bf16.mxu0 0
      %804 = vmatmul.mubr.bf16.gmra.mrb[0].mxu0 %v748
      %v805 = vpop.f32.mrb[0].mxu0
      %v806 = vadd.f32 %v726, %v805
      %v807 = vpop.f32.mrb[0].mxu0
      %v808 = vpop.f32.mrb[0].mxu0
      %v809 = vadd.f32 %v727, %v808
      %v810 = vpop.f32.mrb[0].mxu0
      %811 = vmatprep.mubr.bf16.mxu0 0
      %812 = vmatmul.mubr.bf16.gmra.mrb[0].mxu0 %v751
      %v813 = vpop.f32.mrb[0].mxu0
      %v814 = vadd.f32 %v728, %v813
      %v815 = vpop.f32.mrb[0].mxu0
      %v816 = vpop.f32.mrb[0].mxu0
      %v817 = vadd.f32 %v729, %v816
      %v818 = vpop.f32.mrb[0].mxu0
      %819 = vmatprep.mubr.bf16.mxu0 0
      %820 = vmatmul.mubr.bf16.gmra.mrb[0].mxu0 %v754
      %v821 = vpop.f32.mrb[0].mxu0
      %v822 = vadd.f32 %v730, %v821
      %v823 = vpop.f32.mrb[0].mxu0
      %v824 = vpop.f32.mrb[0].mxu0
      %v825 = vadd.f32 %v731, %v824
      %v826 = vpop.f32.mrb[0].mxu0
      %827 = vmatprep.mubr.bf16.mxu0 0
      %828 = vmatmul.mubr.bf16.gmra.mrb[0].mxu0 %v757
      %v829 = vpop.f32.mrb[0].mxu0
      %v830 = vadd.f32 %v732, %v829
      %v831 = vpop.f32.mrb[0].mxu0
      %v832 = vpop.f32.mrb[0].mxu0
      %v833 = vadd.f32 %v733, %v832
      %v834 = vpop.f32.mrb[0].mxu0
      %835 = vdwg.mxu0
      %vm836 = vcmask 523264
      %v837 = vsel %vm836, %v806, -inf
      %838 = vmax.xlane.f32.xlu0 %v837
      %v839 = vpop.xlane.xlu0 %838
      %v840 = vsel %vm836, %v809, -inf
      %841 = vmax.xlane.f32.xlu0 %v840
      %v842 = vpop.xlane.xlu0 %841
      %v843 = vsel %vm836, %v814, -inf
      %844 = vmax.xlane.f32.xlu0 %v843
      %v845 = vpop.xlane.xlu0 %844
      %v846 = vsel %vm836, %v817, -inf
      %847 = vmax.xlane.f32.xlu0 %v846
      %v848 = vpop.xlane.xlu0 %847
      %v849 = vsel %vm836, %v822, -inf
      %850 = vmax.xlane.f32.xlu0 %v849
      %v851 = vpop.xlane.xlu0 %850
      %v852 = vsel %vm836, %v825, -inf
      %853 = vmax.xlane.f32.xlu0 %v852
      %v854 = vpop.xlane.xlu0 %853
      %v855 = vsel %vm836, %v830, -inf
      %856 = vmax.xlane.f32.xlu0 %v855
      %v857 = vpop.xlane.xlu0 %856
      %v858 = vsel %vm836, %v833, -inf
      %859 = vmax.xlane.f32.xlu0 %v858
      %v860 = vpop.xlane.xlu0 %859
      %v861 = vsub.f32 %v806, %v839
      %v862 = vsub.f32 %v809, %v842
      %v863 = vsub.f32 %v814, %v845
      %v864 = vsub.f32 %v817, %v848
      %v865 = vsub.f32 %v822, %v851
      %v866 = vsub.f32 %v825, %v854
      %v867 = vsub.f32 %v830, %v857
      %v868 = vsub.f32 %v833, %v860
      %v869 = vmul.f32 %v861, 1.442695
      %v870 = vpow.pop %v869
      %v871 = vmul.f32 %v862, 1.442695
      %v872 = vpow.pop %v871
      %v873 = vmul.f32 %v863, 1.442695
      %v874 = vpow.pop %v873
      %v875 = vmul.f32 %v864, 1.442695
      %v876 = vpow.pop %v875
      %v877 = vmul.f32 %v865, 1.442695
      %v878 = vpow.pop %v877
      %v879 = vmul.f32 %v866, 1.442695
      %v880 = vpow.pop %v879
      %v881 = vmul.f32 %v867, 1.442695
      %v882 = vpow.pop %v881
      %v883 = vmul.f32 %v868, 1.442695
      %v884 = vpow.pop %v883
      %v885 = vsel %vm836, %v870, 0.0
      %886 = vadd.xlane.f32.xlu0 %v885
      %v887 = vpop.xlane.xlu0 %886
      %v888 = vsel %vm836, %v872, 0.0
      %889 = vadd.xlane.f32.xlu0 %v888
      %v890 = vpop.xlane.xlu0 %889
      %v891 = vsel %vm836, %v874, 0.0
      %892 = vadd.xlane.f32.xlu0 %v891
      %v893 = vpop.xlane.xlu0 %892
      %v894 = vsel %vm836, %v876, 0.0
      %895 = vadd.xlane.f32.xlu0 %v894
      %v896 = vpop.xlane.xlu0 %895
      %v897 = vsel %vm836, %v878, 0.0
      %898 = vadd.xlane.f32.xlu0 %v897
      %v899 = vpop.xlane.xlu0 %898
      %v900 = vsel %vm836, %v880, 0.0
      %901 = vadd.xlane.f32.xlu0 %v900
      %v902 = vpop.xlane.xlu0 %901
      %v903 = vsel %vm836, %v882, 0.0
      %904 = vadd.xlane.f32.xlu0 %v903
      %v905 = vpop.xlane.xlu0 %904
      %v906 = vsel %vm836, %v884, 0.0
      %907 = vadd.xlane.f32.xlu0 %v906
      %v908 = vpop.xlane.xlu0 %907
      %v909 = vrcp.pop %v887
      %v910 = vrcp.pop %v890
      %v911 = vrcp.pop %v893
      %v912 = vrcp.pop %v896
      %v913 = vrcp.pop %v899
      %v914 = vrcp.pop %v902
      %v915 = vrcp.pop %v905
      %v916 = vrcp.pop %v908
      %v917 = vmul.f32 %v870, %v909
      %v918 = vmul.f32 %v872, %v910
      %v919 = vmul.f32 %v874, %v911
      %v920 = vmul.f32 %v876, %v912
      %v921 = vmul.f32 %v878, %v913
      %v922 = vmul.f32 %v880, %v914
      %v923 = vmul.f32 %v882, %v915
      %v924 = vmul.f32 %v884, %v916
      %vm925 = vcmp.ge.s32.totalorder %v721, 0
      %vm926 = vcmp.lt.s32.totalorder %v721, 16
      %vm927 = vmand %vm925, %vm926
      %v928 = vsel %vm927, 1, 0
      %vm929 = vcmp.eq.s32.totalorder %v928, 1
      %938 = vrot.lane.b32.xlu0 %v690, 64
      %v939 = vpop.permute.xlu0 %938
      %940 = vrot.lane.b32.xlu0 %v693, 64
      %v941 = vpop.permute.xlu0 %940
      %942 = vrot.lane.b32.xlu0 %v698, 64
      %v943 = vpop.permute.xlu0 %942
      %944 = vrot.lane.b32.xlu0 %v701, 64
      %v945 = vpop.permute.xlu0 %944
      %946 = vrot.lane.b32.xlu0 %v706, 64
      %v947 = vpop.permute.xlu0 %946
      %948 = vrot.lane.b32.xlu0 %v709, 64
      %v949 = vpop.permute.xlu0 %948
      %950 = vrot.lane.b32.xlu0 %v714, 64
      %v951 = vpop.permute.xlu0 %950
      %952 = vrot.lane.b32.xlu0 %v717, 64
      %v953 = vpop.permute.xlu0 %952
      %v962 = vsel %vm929, %v939, 0.0
      %v963 = vsel %vm929, %v941, 0.0
      %v964 = vsel %vm929, %v943, 0.0
      %v965 = vsel %vm929, %v945, 0.0
      %v966 = vsel %vm929, %v947, 0.0
      %v967 = vsel %vm929, %v949, 0.0
      %v968 = vsel %vm929, %v951, 0.0
      %v969 = vsel %vm929, %v953, 0.0
      %v970 = vpack.c.bf16 %v963, %v962
      %v971 = vpack.c.bf16 %v965, %v964
      %v972 = vpack.c.bf16 %v967, %v966
      %v973 = vpack.c.bf16 %v969, %v968
      %v974 = vpack.c.bf16 %v918, %v917
      %v975 = vpack.c.bf16 %v920, %v919
      %v976 = vpack.c.bf16 %v922, %v921
      %v977 = vpack.c.bf16 %v924, %v923
      %s978 = scalar_lea.vmem %s1, 64
      %v979 = vld [vmem:[%s978] sm:$0xff]
      %v980 = vld [vmem:[%s978 + $0x8] sm:$0xff]
      %v981 = vld [vmem:[%s978 + $0x10] sm:$0xff]
      %v982 = vld [vmem:[%s978 + $0x18] sm:$0xff]
      %v983 = vld [vmem:[%s978 + $0x20] sm:$0xff]
      %v984 = vld [vmem:[%s978 + $0x28] sm:$0xff]
      %v985 = vld [vmem:[%s978 + $0x30] sm:$0xff]
      %v986 = vld [vmem:[%s978 + $0x38] sm:$0xff]
      %987 = vrot.lane.b32.xlu0 %v722, 112
      %v988 = vpop.permute.xlu0 %987
      %989 = vrot.lane.b32.xlu0 %v723, 112
      %v990 = vpop.permute.xlu0 %989
      %991 = vrot.lane.b32.xlu0 %v724, 112
      %v992 = vpop.permute.xlu0 %991
      %993 = vrot.lane.b32.xlu0 %v725, 112
      %v994 = vpop.permute.xlu0 %993
      %995 = vrot.lane.b32.xlu0 %v722, 80
      %v996 = vpop.permute.xlu0 %995
      %997 = vrot.lane.b32.xlu0 %v723, 80
      %v998 = vpop.permute.xlu0 %997
      %999 = vrot.lane.b32.xlu0 %v724, 80
      %v1000 = vpop.permute.xlu0 %999
      %1001 = vrot.lane.b32.xlu0 %v725, 80
      %v1002 = vpop.permute.xlu0 %1001
      %v1004 = vsel %vm746, %v988, 0
      %v1007 = vsel %vm746, %v990, 0
      %v1010 = vsel %vm746, %v992, 0
      %v1013 = vsel %vm746, %v994, 0
      %v1016 = vsel %vm746, %v996, 0
      %v1019 = vsel %vm746, %v998, 0
      %v1022 = vsel %vm746, %v1000, 0
      %v1025 = vsel %vm746, %v1002, 0
      %1027 = vmatprep.subr.bf16.mxu0 0
      %1028 = vmatpush1.bf16.xpose.msra.mxu0 %v1016
      %1029 = vmatprep.subr.bf16.mxu0 0
      %1030 = vmatpush1.bf16.xpose.msra.mxu0 %v1019
      %1031 = vmatprep.subr.bf16.mxu0 0
      %1032 = vmatpush1.bf16.xpose.msra.mxu0 %v1022
      %1033 = vmatprep.subr.bf16.mxu0 0
      %1034 = vmatpush1.bf16.xpose.msra.mxu0 %v1025
      %1035 = vmatprep.subr.bf16.mxu0 0
      %1036 = vmatpush1.bf16.xpose.msra.mxu0 0
      %1037 = vmatprep.subr.bf16.mxu0 0
      %1038 = vmatpush1.bf16.xpose.msra.mxu0 0
      %1039 = vmatprep.subr.bf16.mxu0 0
      %1040 = vmatpush1.bf16.xpose.msra.mxu0 0
      %1041 = vmatprep.subr.bf16.mxu0 0
      %1042 = vmatpush1.bf16.xpose.msra.mxu0 0
      %1043 = vmatprep.subr.bf16.mxu0 0
      %1044 = vmatpush1.bf16.xpose.msra.mxu0 0
      %1045 = vmatprep.subr.bf16.mxu0 0
      %1046 = vmatpush1.bf16.xpose.msra.mxu0 0
      %1047 = vmatprep.subr.bf16.mxu0 0
      %1048 = vmatpush1.bf16.xpose.msra.mxu0 0
      %1049 = vmatprep.subr.bf16.mxu0 0
      %1050 = vmatpush1.bf16.xpose.msra.mxu0 0
      %1051 = vmatprep.subr.bf16.mxu0 0
      %1052 = vmatpush1.bf16.xpose.msra.mxu0 0
      %1053 = vmatprep.subr.bf16.mxu0 0
      %1054 = vmatpush1.bf16.xpose.msra.mxu0 0
      %1055 = vmatprep.subr.bf16.mxu0 0
      %1056 = vmatpush1.bf16.xpose.msra.mxu0 0
      %1057 = vmatprep.subr.bf16.mxu0 0
      %1058 = vmatpush1.bf16.xpose.msra.mxu0 0
      %1059 = vmatprep.mubr.bf16.mxu0 0
      %1060 = vmatmul.mubr.bf16.gmra.mrb[0].mxu0 %v1004
      %v1061 = vpop.f32.mrb[0].mxu0
      %v1062 = vadd.f32 %v979, %v1061
      %v1063 = vpop.f32.mrb[0].mxu0
      %v1064 = vpop.f32.mrb[0].mxu0
      %v1065 = vadd.f32 %v980, %v1064
      %v1066 = vpop.f32.mrb[0].mxu0
      %1067 = vmatprep.mubr.bf16.mxu0 0
      %1068 = vmatmul.mubr.bf16.gmra.mrb[0].mxu0 %v1007
      %v1069 = vpop.f32.mrb[0].mxu0
      %v1070 = vadd.f32 %v981, %v1069
      %v1071 = vpop.f32.mrb[0].mxu0
      %v1072 = vpop.f32.mrb[0].mxu0
      %v1073 = vadd.f32 %v982, %v1072
      %v1074 = vpop.f32.mrb[0].mxu0
      %1075 = vmatprep.mubr.bf16.mxu0 0
      %1076 = vmatmul.mubr.bf16.gmra.mrb[0].mxu0 %v1010
      %v1077 = vpop.f32.mrb[0].mxu0
      %v1078 = vadd.f32 %v983, %v1077
      %v1079 = vpop.f32.mrb[0].mxu0
      %v1080 = vpop.f32.mrb[0].mxu0
      %v1081 = vadd.f32 %v984, %v1080
      %v1082 = vpop.f32.mrb[0].mxu0
      %1083 = vmatprep.mubr.bf16.mxu0 0
      %1084 = vmatmul.mubr.bf16.gmra.mrb[0].mxu0 %v1013
      %v1085 = vpop.f32.mrb[0].mxu0
      %v1086 = vadd.f32 %v985, %v1085
      %v1087 = vpop.f32.mrb[0].mxu0
      %v1088 = vpop.f32.mrb[0].mxu0
      %v1089 = vadd.f32 %v986, %v1088
      %v1090 = vpop.f32.mrb[0].mxu0
      %1091 = vdwg.mxu0
      %v1092 = vsel %vm836, %v1062, -inf
      %1093 = vmax.xlane.f32.xlu0 %v1092
      %v1094 = vpop.xlane.xlu0 %1093
      %v1095 = vsel %vm836, %v1065, -inf
      %1096 = vmax.xlane.f32.xlu0 %v1095
      %v1097 = vpop.xlane.xlu0 %1096
      %v1098 = vsel %vm836, %v1070, -inf
      %1099 = vmax.xlane.f32.xlu0 %v1098
      %v1100 = vpop.xlane.xlu0 %1099
      %v1101 = vsel %vm836, %v1073, -inf
      %1102 = vmax.xlane.f32.xlu0 %v1101
      %v1103 = vpop.xlane.xlu0 %1102
      %v1104 = vsel %vm836, %v1078, -inf
      %1105 = vmax.xlane.f32.xlu0 %v1104
      %v1106 = vpop.xlane.xlu0 %1105
      %v1107 = vsel %vm836, %v1081, -inf
      %1108 = vmax.xlane.f32.xlu0 %v1107
      %v1109 = vpop.xlane.xlu0 %1108
      %v1110 = vsel %vm836, %v1086, -inf
      %1111 = vmax.xlane.f32.xlu0 %v1110
      %v1112 = vpop.xlane.xlu0 %1111
      %v1113 = vsel %vm836, %v1089, -inf
      %1114 = vmax.xlane.f32.xlu0 %v1113
      %v1115 = vpop.xlane.xlu0 %1114
      %v1116 = vsub.f32 %v1062, %v1094
      %v1117 = vsub.f32 %v1065, %v1097
      %v1118 = vsub.f32 %v1070, %v1100
      %v1119 = vsub.f32 %v1073, %v1103
      %v1120 = vsub.f32 %v1078, %v1106
      %v1121 = vsub.f32 %v1081, %v1109
      %v1122 = vsub.f32 %v1086, %v1112
      %v1123 = vsub.f32 %v1089, %v1115
      %v1124 = vmul.f32 %v1116, 1.442695
      %v1125 = vpow.pop %v1124
      %v1126 = vmul.f32 %v1117, 1.442695
      %v1127 = vpow.pop %v1126
      %v1128 = vmul.f32 %v1118, 1.442695
      %v1129 = vpow.pop %v1128
      %v1130 = vmul.f32 %v1119, 1.442695
      %v1131 = vpow.pop %v1130
      %v1132 = vmul.f32 %v1120, 1.442695
      %v1133 = vpow.pop %v1132
      %v1134 = vmul.f32 %v1121, 1.442695
      %v1135 = vpow.pop %v1134
      %v1136 = vmul.f32 %v1122, 1.442695
      %v1137 = vpow.pop %v1136
      %v1138 = vmul.f32 %v1123, 1.442695
      %v1139 = vpow.pop %v1138
      %v1140 = vsel %vm836, %v1125, 0.0
      %1141 = vadd.xlane.f32.xlu0 %v1140
      %v1142 = vpop.xlane.xlu0 %1141
      %v1143 = vsel %vm836, %v1127, 0.0
      %1144 = vadd.xlane.f32.xlu0 %v1143
      %v1145 = vpop.xlane.xlu0 %1144
      %v1146 = vsel %vm836, %v1129, 0.0
      %1147 = vadd.xlane.f32.xlu0 %v1146
      %v1148 = vpop.xlane.xlu0 %1147
      %v1149 = vsel %vm836, %v1131, 0.0
      %1150 = vadd.xlane.f32.xlu0 %v1149
      %v1151 = vpop.xlane.xlu0 %1150
      %v1152 = vsel %vm836, %v1133, 0.0
      %1153 = vadd.xlane.f32.xlu0 %v1152
      %v1154 = vpop.xlane.xlu0 %1153
      %v1155 = vsel %vm836, %v1135, 0.0
      %1156 = vadd.xlane.f32.xlu0 %v1155
      %v1157 = vpop.xlane.xlu0 %1156
      %v1158 = vsel %vm836, %v1137, 0.0
      %1159 = vadd.xlane.f32.xlu0 %v1158
      %v1160 = vpop.xlane.xlu0 %1159
      %v1161 = vsel %vm836, %v1139, 0.0
      %1162 = vadd.xlane.f32.xlu0 %v1161
      %v1163 = vpop.xlane.xlu0 %1162
      %v1164 = vrcp.pop %v1142
      %v1165 = vrcp.pop %v1145
      %v1166 = vrcp.pop %v1148
      %v1167 = vrcp.pop %v1151
      %v1168 = vrcp.pop %v1154
      %v1169 = vrcp.pop %v1157
      %v1170 = vrcp.pop %v1160
      %v1171 = vrcp.pop %v1163
      %v1172 = vmul.f32 %v1125, %v1164
      %v1173 = vmul.f32 %v1127, %v1165
      %v1174 = vmul.f32 %v1129, %v1166
      %v1175 = vmul.f32 %v1131, %v1167
      %v1176 = vmul.f32 %v1133, %v1168
      %v1177 = vmul.f32 %v1135, %v1169
      %v1178 = vmul.f32 %v1137, %v1170
      %v1179 = vmul.f32 %v1139, %v1171
      %vm1180 = vcmp.ge.s32.totalorder %v721, 16
      %vm1181 = vcmp.lt.s32.totalorder %v721, 32
      %vm1182 = vmand %vm1180, %vm1181
      %v1183 = vsel %vm1182, 1, 0
      %vm1184 = vcmp.eq.s32.totalorder %v1183, 1
      %v1185 = vsel %vm1184, %v939, 0.0
      %v1186 = vsel %vm1184, %v941, 0.0
      %v1187 = vsel %vm1184, %v943, 0.0
      %v1188 = vsel %vm1184, %v945, 0.0
      %v1189 = vsel %vm1184, %v947, 0.0
      %v1190 = vsel %vm1184, %v949, 0.0
      %v1191 = vsel %vm1184, %v951, 0.0
      %v1192 = vsel %vm1184, %v953, 0.0
      %v1193 = vpack.c.bf16 %v1186, %v1185
      %v1194 = vpack.c.bf16 %v1188, %v1187
      %v1195 = vpack.c.bf16 %v1190, %v1189
      %v1196 = vpack.c.bf16 %v1192, %v1191
      %v1197 = vpack.c.bf16 %v1173, %v1172
      %v1198 = vpack.c.bf16 %v1175, %v1174
      %v1199 = vpack.c.bf16 %v1177, %v1176
      %v1200 = vpack.c.bf16 %v1179, %v1178
      %v1202 = vsel %vm836, %v1197, 0
      %v1205 = vsel %vm836, %v1198, 0
      %v1208 = vsel %vm836, %v1199, 0
      %v1211 = vsel %vm836, %v1200, 0
      %1213 = vmatprep.subr.bf16.mxu0 0
      %1214 = vmatpush1.bf16.msra.mxu0 %v1193
      %1215 = vmatprep.subr.bf16.mxu0 0
      %1216 = vmatpush1.bf16.msra.mxu0 %v1194
      %1217 = vmatprep.subr.bf16.mxu0 0
      %1218 = vmatpush1.bf16.msra.mxu0 %v1195
      %1219 = vmatprep.subr.bf16.mxu0 0
      %1220 = vmatpush1.bf16.msra.mxu0 %v1196
      %1221 = vmatprep.subr.bf16.mxu0 0
      %1222 = vmatpush1.bf16.msra.mxu0 0
      %1223 = vmatprep.subr.bf16.mxu0 0
      %1224 = vmatpush1.bf16.msra.mxu0 0
      %1225 = vmatprep.subr.bf16.mxu0 0
      %1226 = vmatpush1.bf16.msra.mxu0 0
      %1227 = vmatprep.subr.bf16.mxu0 0
      %1228 = vmatpush1.bf16.msra.mxu0 0
      %1229 = vmatprep.subr.bf16.mxu0 0
      %1230 = vmatpush1.bf16.msra.mxu0 0
      %1231 = vmatprep.subr.bf16.mxu0 0
      %1232 = vmatpush1.bf16.msra.mxu0 0
      %1233 = vmatprep.subr.bf16.mxu0 0
      %1234 = vmatpush1.bf16.msra.mxu0 0
      %1235 = vmatprep.subr.bf16.mxu0 0
      %1236 = vmatpush1.bf16.msra.mxu0 0
      %1237 = vmatprep.subr.bf16.mxu0 0
      %1238 = vmatpush1.bf16.msra.mxu0 0
      %1239 = vmatprep.subr.bf16.mxu0 0
      %1240 = vmatpush1.bf16.msra.mxu0 0
      %1241 = vmatprep.subr.bf16.mxu0 0
      %1242 = vmatpush1.bf16.msra.mxu0 0
      %1243 = vmatprep.subr.bf16.mxu0 0
      %1244 = vmatpush1.bf16.msra.mxu0 0
      %1245 = vmatprep.mubr.bf16.mxu0 0
      %1246 = vmatmul.mubr.bf16.gmra.mrb[0].mxu0 %v1202
      %v1247 = vpop.f32.mrb[0].mxu0
      %v1248 = vadd.f32 0.0, %v1247
      %v1249 = vpop.f32.mrb[0].mxu0
      %v1250 = vpop.f32.mrb[0].mxu0
      %v1251 = vadd.f32 0.0, %v1250
      %v1252 = vpop.f32.mrb[0].mxu0
      %1253 = vmatprep.mubr.bf16.mxu0 0
      %1254 = vmatmul.mubr.bf16.gmra.mrb[0].mxu0 %v1205
      %v1255 = vpop.f32.mrb[0].mxu0
      %v1256 = vadd.f32 0.0, %v1255
      %v1257 = vpop.f32.mrb[0].mxu0
      %v1258 = vpop.f32.mrb[0].mxu0
      %v1259 = vadd.f32 0.0, %v1258
      %v1260 = vpop.f32.mrb[0].mxu0
      %1261 = vmatprep.mubr.bf16.mxu0 0
      %1262 = vmatmul.mubr.bf16.gmra.mrb[0].mxu0 %v1208
      %v1263 = vpop.f32.mrb[0].mxu0
      %v1264 = vadd.f32 0.0, %v1263
      %v1265 = vpop.f32.mrb[0].mxu0
      %v1266 = vpop.f32.mrb[0].mxu0
      %v1267 = vadd.f32 0.0, %v1266
      %v1268 = vpop.f32.mrb[0].mxu0
      %1269 = vmatprep.mubr.bf16.mxu0 0
      %1270 = vmatmul.mubr.bf16.gmra.mrb[0].mxu0 %v1211
      %v1271 = vpop.f32.mrb[0].mxu0
      %v1272 = vadd.f32 0.0, %v1271
      %v1273 = vpop.f32.mrb[0].mxu0
      %v1274 = vpop.f32.mrb[0].mxu0
      %v1275 = vadd.f32 0.0, %v1274
      %v1276 = vpop.f32.mrb[0].mxu0
      %1277 = vdwg.mxu0
      %v1279 = vsel %vm836, %v974, 0
      %v1282 = vsel %vm836, %v975, 0
      %v1285 = vsel %vm836, %v976, 0
      %v1288 = vsel %vm836, %v977, 0
      %1290 = vmatprep.subr.bf16.mxu0 0
      %1291 = vmatpush1.bf16.msra.mxu0 %v970
      %1292 = vmatprep.subr.bf16.mxu0 0
      %1293 = vmatpush1.bf16.msra.mxu0 %v971
      %1294 = vmatprep.subr.bf16.mxu0 0
      %1295 = vmatpush1.bf16.msra.mxu0 %v972
      %1296 = vmatprep.subr.bf16.mxu0 0
      %1297 = vmatpush1.bf16.msra.mxu0 %v973
      %1298 = vmatprep.subr.bf16.mxu0 0
      %1299 = vmatpush1.bf16.msra.mxu0 0
      %1300 = vmatprep.subr.bf16.mxu0 0
      %1301 = vmatpush1.bf16.msra.mxu0 0
      %1302 = vmatprep.subr.bf16.mxu0 0
      %1303 = vmatpush1.bf16.msra.mxu0 0
      %1304 = vmatprep.subr.bf16.mxu0 0
      %1305 = vmatpush1.bf16.msra.mxu0 0
      %1306 = vmatprep.subr.bf16.mxu0 0
      %1307 = vmatpush1.bf16.msra.mxu0 0
      %1308 = vmatprep.subr.bf16.mxu0 0
      %1309 = vmatpush1.bf16.msra.mxu0 0
      %1310 = vmatprep.subr.bf16.mxu0 0
      %1311 = vmatpush1.bf16.msra.mxu0 0
      %1312 = vmatprep.subr.bf16.mxu0 0
      %1313 = vmatpush1.bf16.msra.mxu0 0
      %1314 = vmatprep.subr.bf16.mxu0 0
      %1315 = vmatpush1.bf16.msra.mxu0 0
      %1316 = vmatprep.subr.bf16.mxu0 0
      %1317 = vmatpush1.bf16.msra.mxu0 0
      %1318 = vmatprep.subr.bf16.mxu0 0
      %1319 = vmatpush1.bf16.msra.mxu0 0
      %1320 = vmatprep.subr.bf16.mxu0 0
      %1321 = vmatpush1.bf16.msra.mxu0 0
      %1322 = vmatprep.mubr.bf16.mxu0 0
      %1323 = vmatmul.mubr.bf16.gmra.mrb[0].mxu0 %v1279
      %v1324 = vpop.f32.mrb[0].mxu0
      %v1325 = vadd.f32 %v1248, %v1324
      %v1326 = vpop.f32.mrb[0].mxu0
      %v1327 = vpop.f32.mrb[0].mxu0
      %v1328 = vadd.f32 %v1251, %v1327
      %v1329 = vpop.f32.mrb[0].mxu0
      %1330 = vmatprep.mubr.bf16.mxu0 0
      %1331 = vmatmul.mubr.bf16.gmra.mrb[0].mxu0 %v1282
      %v1332 = vpop.f32.mrb[0].mxu0
      %v1333 = vadd.f32 %v1256, %v1332
      %v1334 = vpop.f32.mrb[0].mxu0
      %v1335 = vpop.f32.mrb[0].mxu0
      %v1336 = vadd.f32 %v1259, %v1335
      %v1337 = vpop.f32.mrb[0].mxu0
      %1338 = vmatprep.mubr.bf16.mxu0 0
      %1339 = vmatmul.mubr.bf16.gmra.mrb[0].mxu0 %v1285
      %v1340 = vpop.f32.mrb[0].mxu0
      %v1341 = vadd.f32 %v1264, %v1340
      %v1342 = vpop.f32.mrb[0].mxu0
      %v1343 = vpop.f32.mrb[0].mxu0
      %v1344 = vadd.f32 %v1267, %v1343
      %v1345 = vpop.f32.mrb[0].mxu0
      %1346 = vmatprep.mubr.bf16.mxu0 0
      %1347 = vmatmul.mubr.bf16.gmra.mrb[0].mxu0 %v1288
      %v1348 = vpop.f32.mrb[0].mxu0
      %v1349 = vadd.f32 %v1272, %v1348
      %v1350 = vpop.f32.mrb[0].mxu0
      %v1351 = vpop.f32.mrb[0].mxu0
      %v1352 = vadd.f32 %v1275, %v1351
      %v1353 = vpop.f32.mrb[0].mxu0
      %1354 = vdwg.mxu0
      %v1355 = vpack.c.bf16 %v1328, %v1325
      %v1356 = vpack.c.bf16 %v1336, %v1333
      %v1357 = vpack.c.bf16 %v1344, %v1341
      %v1358 = vpack.c.bf16 %v1352, %v1349
      %v1359 = vld [vmem:[%s6] sm:$0xf]
      %v1360 = vld [vmem:[%s6 + $0x4] sm:$0xf]
      %v1361 = vld [vmem:[%s6 + $0x8] sm:$0xf]
      %v1362 = vld [vmem:[%s6 + $0xc] sm:$0xf]
      %v1367 = vunpack.c.l.b16 %v1359
      %v1368 = vunpack.c.l.b16 %v1360
      %v1369 = vunpack.c.l.b16 %v1361
      %v1370 = vunpack.c.l.b16 %v1362
      %v1371 = vpack.c.b16 %v1368, %v1367
      %v1372 = vpack.c.b16 %v1370, %v1369
      %v1376 = vsel %vm482, %v1355, 0
      %v1379 = vsel %vm482, %v1356, 0
      %v1382 = vsel %vm482, %v1357, 0
      %v1385 = vsel %vm482, %v1358, 0
      %1387 = vmatprep.subr.bf16.mxu0 0
      %1388 = vmatpush1.bf16.msra.mxu0 %v1371
      %1389 = vmatprep.subr.bf16.mxu0 0
      %1390 = vmatpush1.bf16.msra.mxu0 %v1372
      %1391 = vmatprep.subr.bf16.mxu0 0
      %1392 = vmatpush1.bf16.msra.mxu0 0
      %1393 = vmatprep.subr.bf16.mxu0 0
      %1394 = vmatpush1.bf16.msra.mxu0 0
      %1395 = vmatprep.subr.bf16.mxu0 0
      %1396 = vmatpush1.bf16.msra.mxu0 0
      %1397 = vmatprep.subr.bf16.mxu0 0
      %1398 = vmatpush1.bf16.msra.mxu0 0
      %1399 = vmatprep.subr.bf16.mxu0 0
      %1400 = vmatpush1.bf16.msra.mxu0 0
      %1401 = vmatprep.subr.bf16.mxu0 0
      %1402 = vmatpush1.bf16.msra.mxu0 0
      %1403 = vmatprep.subr.bf16.mxu0 0
      %1404 = vmatpush1.bf16.msra.mxu0 0
      %1405 = vmatprep.subr.bf16.mxu0 0
      %1406 = vmatpush1.bf16.msra.mxu0 0
      %1407 = vmatprep.subr.bf16.mxu0 0
      %1408 = vmatpush1.bf16.msra.mxu0 0
      %1409 = vmatprep.subr.bf16.mxu0 0
      %1410 = vmatpush1.bf16.msra.mxu0 0
      %1411 = vmatprep.subr.bf16.mxu0 0
      %1412 = vmatpush1.bf16.msra.mxu0 0
      %1413 = vmatprep.subr.bf16.mxu0 0
      %1414 = vmatpush1.bf16.msra.mxu0 0
      %1415 = vmatprep.subr.bf16.mxu0 0
      %1416 = vmatpush1.bf16.msra.mxu0 0
      %1417 = vmatprep.subr.bf16.mxu0 0
      %1418 = vmatpush1.bf16.msra.mxu0 0
      %1419 = vmatprep.mubr.bf16.mxu0 0
      %1420 = vmatmul.mubr.bf16.gmra.mrb[0].mxu0 %v1376
      %v1421 = vpop.f32.mrb[0].mxu0
      %v1422 = vadd.f32 0.0, %v1421
      %v1423 = vpop.f32.mrb[0].mxu0
      %v1424 = vpop.f32.mrb[0].mxu0
      %v1425 = vadd.f32 0.0, %v1424
      %v1426 = vpop.f32.mrb[0].mxu0
      %1427 = vmatprep.mubr.bf16.mxu0 0
      %1428 = vmatmul.mubr.bf16.gmra.mrb[0].mxu0 %v1379
      %v1429 = vpop.f32.mrb[0].mxu0
      %v1430 = vadd.f32 0.0, %v1429
      %v1431 = vpop.f32.mrb[0].mxu0
      %v1432 = vpop.f32.mrb[0].mxu0
      %v1433 = vadd.f32 0.0, %v1432
      %v1434 = vpop.f32.mrb[0].mxu0
      %1435 = vmatprep.mubr.bf16.mxu0 0
      %1436 = vmatmul.mubr.bf16.gmra.mrb[0].mxu0 %v1382
      %v1437 = vpop.f32.mrb[0].mxu0
      %v1438 = vadd.f32 0.0, %v1437
      %v1439 = vpop.f32.mrb[0].mxu0
      %v1440 = vpop.f32.mrb[0].mxu0
      %v1441 = vadd.f32 0.0, %v1440
      %v1442 = vpop.f32.mrb[0].mxu0
      %1443 = vmatprep.mubr.bf16.mxu0 0
      %1444 = vmatmul.mubr.bf16.gmra.mrb[0].mxu0 %v1385
      %v1445 = vpop.f32.mrb[0].mxu0
      %v1446 = vadd.f32 0.0, %v1445
      %v1447 = vpop.f32.mrb[0].mxu0
      %v1448 = vpop.f32.mrb[0].mxu0
      %v1449 = vadd.f32 0.0, %v1448
      %v1450 = vpop.f32.mrb[0].mxu0
      %1451 = vdwg.mxu0
      %v1452 = vadd.f32 %v472, %v1422
      %v1453 = vadd.f32 %v473, %v1425
      %v1454 = vadd.f32 %v474, %v1430
      %v1455 = vadd.f32 %v475, %v1433
      %v1456 = vadd.f32 %v476, %v1438
      %v1457 = vadd.f32 %v477, %v1441
      %v1458 = vadd.f32 %v478, %v1446
      %v1459 = vadd.f32 %v479, %v1449
      %v1460 = vld [vmem:[%s7] sm:$0x1]
      %v1462 = vlaneseq
      %v1463 = vshrl.u32 %v1462, 7
      %v1464 = vsub.s32 0, %v1463
      %v1465 = vrot.slane %v1460, %v1464
      %v1467 = vadd.f32 %v1452, %v1465
      %v1468 = vadd.f32 %v1453, %v1465
      %v1469 = vadd.f32 %v1454, %v1465
      %v1470 = vadd.f32 %v1455, %v1465
      %v1471 = vadd.f32 %v1456, %v1465
      %v1472 = vadd.f32 %v1457, %v1465
      %v1473 = vadd.f32 %v1458, %v1465
      %v1474 = vadd.f32 %v1459, %v1465
      %v1475 = vld [vmem:[%s8] sm:$0x1]
      %v1476 = vld [vmem:[%s9] sm:$0x1]
      %v1477 = vsel %vm482, %v1467, 0.0
      %1478 = vadd.xlane.f32.xlu0 %v1477
      %v1479 = vpop.xlane.xlu0 %1478
      %v1480 = vsel %vm482, %v1468, 0.0
      %1481 = vadd.xlane.f32.xlu0 %v1480
      %v1482 = vpop.xlane.xlu0 %1481
      %v1483 = vsel %vm482, %v1469, 0.0
      %1484 = vadd.xlane.f32.xlu0 %v1483
      %v1485 = vpop.xlane.xlu0 %1484
      %v1486 = vsel %vm482, %v1470, 0.0
      %1487 = vadd.xlane.f32.xlu0 %v1486
      %v1488 = vpop.xlane.xlu0 %1487
      %v1489 = vsel %vm482, %v1471, 0.0
      %1490 = vadd.xlane.f32.xlu0 %v1489
      %v1491 = vpop.xlane.xlu0 %1490
      %v1492 = vsel %vm482, %v1472, 0.0
      %1493 = vadd.xlane.f32.xlu0 %v1492
      %v1494 = vpop.xlane.xlu0 %1493
      %v1495 = vsel %vm482, %v1473, 0.0
      %1496 = vadd.xlane.f32.xlu0 %v1495
      %v1497 = vpop.xlane.xlu0 %1496
      %v1498 = vsel %vm482, %v1474, 0.0
      %1499 = vadd.xlane.f32.xlu0 %v1498
      %v1500 = vpop.xlane.xlu0 %1499
      %v1501 = vmul.f32 %v1479, %v507
      %v1502 = vmul.f32 %v1482, %v507
      %v1503 = vmul.f32 %v1485, %v507
      %v1504 = vmul.f32 %v1488, %v507
      %v1505 = vmul.f32 %v1491, %v507
      %v1506 = vmul.f32 %v1494, %v507
      %v1507 = vmul.f32 %v1497, %v507
      %v1508 = vmul.f32 %v1500, %v507
      %v1509 = vsub.f32 %v1467, %v1501
      %v1510 = vsub.f32 %v1468, %v1502
      %v1511 = vsub.f32 %v1469, %v1503
      %v1512 = vsub.f32 %v1470, %v1504
      %v1513 = vsub.f32 %v1471, %v1505
      %v1514 = vsub.f32 %v1472, %v1506
      %v1515 = vsub.f32 %v1473, %v1507
      %v1516 = vsub.f32 %v1474, %v1508
      %v1517 = vmul.f32 %v1509, %v1509
      %v1518 = vmul.f32 %v1510, %v1510
      %v1519 = vmul.f32 %v1511, %v1511
      %v1520 = vmul.f32 %v1512, %v1512
      %v1521 = vmul.f32 %v1513, %v1513
      %v1522 = vmul.f32 %v1514, %v1514
      %v1523 = vmul.f32 %v1515, %v1515
      %v1524 = vmul.f32 %v1516, %v1516
      %v1525 = vsel %vm482, %v1517, 0.0
      %1526 = vadd.xlane.f32.xlu0 %v1525
      %v1527 = vpop.xlane.xlu0 %1526
      %v1528 = vsel %vm482, %v1518, 0.0
      %1529 = vadd.xlane.f32.xlu0 %v1528
      %v1530 = vpop.xlane.xlu0 %1529
      %v1531 = vsel %vm482, %v1519, 0.0
      %1532 = vadd.xlane.f32.xlu0 %v1531
      %v1533 = vpop.xlane.xlu0 %1532
      %v1534 = vsel %vm482, %v1520, 0.0
      %1535 = vadd.xlane.f32.xlu0 %v1534
      %v1536 = vpop.xlane.xlu0 %1535
      %v1537 = vsel %vm482, %v1521, 0.0
      %1538 = vadd.xlane.f32.xlu0 %v1537
      %v1539 = vpop.xlane.xlu0 %1538
      %v1540 = vsel %vm482, %v1522, 0.0
      %1541 = vadd.xlane.f32.xlu0 %v1540
      %v1542 = vpop.xlane.xlu0 %1541
      %v1543 = vsel %vm482, %v1523, 0.0
      %1544 = vadd.xlane.f32.xlu0 %v1543
      %v1545 = vpop.xlane.xlu0 %1544
      %v1546 = vsel %vm482, %v1524, 0.0
      %1547 = vadd.xlane.f32.xlu0 %v1546
      %v1548 = vpop.xlane.xlu0 %1547
      %v1549 = vmul.f32 %v1527, %v507
      %v1550 = vmul.f32 %v1530, %v507
      %v1551 = vmul.f32 %v1533, %v507
      %v1552 = vmul.f32 %v1536, %v507
      %v1553 = vmul.f32 %v1539, %v507
      %v1554 = vmul.f32 %v1542, %v507
      %v1555 = vmul.f32 %v1545, %v507
      %v1556 = vmul.f32 %v1548, %v507
      %v1557 = vadd.f32 %v1549, 1e-05
      %v1558 = vadd.f32 %v1550, 1e-05
      %v1559 = vadd.f32 %v1551, 1e-05
      %v1560 = vadd.f32 %v1552, 1e-05
      %v1561 = vadd.f32 %v1553, 1e-05
      %v1562 = vadd.f32 %v1554, 1e-05
      %v1563 = vadd.f32 %v1555, 1e-05
      %v1564 = vadd.f32 %v1556, 1e-05
      %v1565 = vrsqrt.pop %v1557
      %v1566 = vrsqrt.pop %v1558
      %v1567 = vrsqrt.pop %v1559
      %v1568 = vrsqrt.pop %v1560
      %v1569 = vrsqrt.pop %v1561
      %v1570 = vrsqrt.pop %v1562
      %v1571 = vrsqrt.pop %v1563
      %v1572 = vrsqrt.pop %v1564
      %v1573 = vmul.f32 %v1509, %v1565
      %v1574 = vmul.f32 %v1510, %v1566
      %v1575 = vmul.f32 %v1511, %v1567
      %v1576 = vmul.f32 %v1512, %v1568
      %v1577 = vmul.f32 %v1513, %v1569
      %v1578 = vmul.f32 %v1514, %v1570
      %v1579 = vmul.f32 %v1515, %v1571
      %v1580 = vmul.f32 %v1516, %v1572
      %v1582 = vlaneseq
      %v1583 = vshrl.u32 %v1582, 7
      %v1584 = vsub.s32 0, %v1583
      %v1585 = vrot.slane %v1475, %v1584
      %v1587 = vmul.f32 %v1573, %v1585
      %v1588 = vmul.f32 %v1574, %v1585
      %v1589 = vmul.f32 %v1575, %v1585
      %v1590 = vmul.f32 %v1576, %v1585
      %v1591 = vmul.f32 %v1577, %v1585
      %v1592 = vmul.f32 %v1578, %v1585
      %v1593 = vmul.f32 %v1579, %v1585
      %v1594 = vmul.f32 %v1580, %v1585
      %v1596 = vlaneseq
      %v1597 = vshrl.u32 %v1596, 7
      %v1598 = vsub.s32 0, %v1597
      %v1599 = vrot.slane %v1476, %v1598
      %v1601 = vadd.f32 %v1587, %v1599
      %v1602 = vadd.f32 %v1588, %v1599
      %v1603 = vadd.f32 %v1589, %v1599
      %v1604 = vadd.f32 %v1590, %v1599
      %v1605 = vadd.f32 %v1591, %v1599
      %v1606 = vadd.f32 %v1592, %v1599
      %v1607 = vadd.f32 %v1593, %v1599
      %v1608 = vadd.f32 %v1594, %v1599
      %v1609 = vpack.c.bf16 %v1602, %v1601
      %v1610 = vpack.c.bf16 %v1604, %v1603
      %v1611 = vpack.c.bf16 %v1606, %v1605
      %v1612 = vpack.c.bf16 %v1608, %v1607
      %v1613 = vld [vmem:[%s10] sm:$0xf]
      %v1614 = vld [vmem:[%s10 + $0x4] sm:$0xf]
      %v1615 = vld [vmem:[%s10 + $0x8] sm:$0xf]
      %v1616 = vld [vmem:[%s10 + $0xc] sm:$0xf]
      %v1617 = vld [vmem:[%s11] sm:$0x1]
      %v1619 = vlaneseq
      %v1620 = vshrl.u32 %v1619, 7
      %v1621 = vsub.s32 0, %v1620
      %v1622 = vrot.slane %v1617, %v1621
      %v1628 = vunpack.c.l.b16 %v1613
      %v1629 = vunpack.c.l.b16 %v1614
      %v1630 = vunpack.c.l.b16 %v1615
      %v1631 = vunpack.c.l.b16 %v1616
      %v1632 = vpack.c.b16 %v1629, %v1628
      %v1633 = vpack.c.b16 %v1631, %v1630
      %v1637 = vsel %vm482, %v1609, 0
      %v1640 = vsel %vm482, %v1610, 0
      %v1643 = vsel %vm482, %v1611, 0
      %v1646 = vsel %vm482, %v1612, 0
      %1648 = vmatprep.subr.bf16.mxu0 0
      %1649 = vmatpush1.bf16.msra.mxu0 %v1632
      %1650 = vmatprep.subr.bf16.mxu0 0
      %1651 = vmatpush1.bf16.msra.mxu0 %v1633
      %1652 = vmatprep.subr.bf16.mxu0 0
      %1653 = vmatpush1.bf16.msra.mxu0 0
      %1654 = vmatprep.subr.bf16.mxu0 0
      %1655 = vmatpush1.bf16.msra.mxu0 0
      %1656 = vmatprep.subr.bf16.mxu0 0
      %1657 = vmatpush1.bf16.msra.mxu0 0
      %1658 = vmatprep.subr.bf16.mxu0 0
      %1659 = vmatpush1.bf16.msra.mxu0 0
      %1660 = vmatprep.subr.bf16.mxu0 0
      %1661 = vmatpush1.bf16.msra.mxu0 0
      %1662 = vmatprep.subr.bf16.mxu0 0
      %1663 = vmatpush1.bf16.msra.mxu0 0
      %1664 = vmatprep.subr.bf16.mxu0 0
      %1665 = vmatpush1.bf16.msra.mxu0 0
      %1666 = vmatprep.subr.bf16.mxu0 0
      %1667 = vmatpush1.bf16.msra.mxu0 0
      %1668 = vmatprep.subr.bf16.mxu0 0
      %1669 = vmatpush1.bf16.msra.mxu0 0
      %1670 = vmatprep.subr.bf16.mxu0 0
      %1671 = vmatpush1.bf16.msra.mxu0 0
      %1672 = vmatprep.subr.bf16.mxu0 0
      %1673 = vmatpush1.bf16.msra.mxu0 0
      %1674 = vmatprep.subr.bf16.mxu0 0
      %1675 = vmatpush1.bf16.msra.mxu0 0
      %1676 = vmatprep.subr.bf16.mxu0 0
      %1677 = vmatpush1.bf16.msra.mxu0 0
      %1678 = vmatprep.subr.bf16.mxu0 0
      %1679 = vmatpush1.bf16.msra.mxu0 0
      %1680 = vmatprep.mubr.bf16.mxu0 0
      %1681 = vmatmul.mubr.bf16.gmra.mrb[0].mxu0 %v1637
      %v1682 = vpop.f32.mrb[0].mxu0
      %v1683 = vadd.f32 %v1622, %v1682
      %v1684 = vpop.f32.mrb[0].mxu0
      %v1685 = vpop.f32.mrb[0].mxu0
      %v1686 = vadd.f32 %v1622, %v1685
      %v1687 = vpop.f32.mrb[0].mxu0
      %1688 = vmatprep.mubr.bf16.mxu0 0
      %1689 = vmatmul.mubr.bf16.gmra.mrb[0].mxu0 %v1640
      %v1690 = vpop.f32.mrb[0].mxu0
      %v1691 = vadd.f32 %v1622, %v1690
      %v1692 = vpop.f32.mrb[0].mxu0
      %v1693 = vpop.f32.mrb[0].mxu0
      %v1694 = vadd.f32 %v1622, %v1693
      %v1695 = vpop.f32.mrb[0].mxu0
      %1696 = vmatprep.mubr.bf16.mxu0 0
      %1697 = vmatmul.mubr.bf16.gmra.mrb[0].mxu0 %v1643
      %v1698 = vpop.f32.mrb[0].mxu0
      %v1699 = vadd.f32 %v1622, %v1698
      %v1700 = vpop.f32.mrb[0].mxu0
      %v1701 = vpop.f32.mrb[0].mxu0
      %v1702 = vadd.f32 %v1622, %v1701
      %v1703 = vpop.f32.mrb[0].mxu0
      %1704 = vmatprep.mubr.bf16.mxu0 0
      %1705 = vmatmul.mubr.bf16.gmra.mrb[0].mxu0 %v1646
      %v1706 = vpop.f32.mrb[0].mxu0
      %v1707 = vadd.f32 %v1622, %v1706
      %v1708 = vpop.f32.mrb[0].mxu0
      %v1709 = vpop.f32.mrb[0].mxu0
      %v1710 = vadd.f32 %v1622, %v1709
      %v1711 = vpop.f32.mrb[0].mxu0
      %1712 = vdwg.mxu0
      %v1713 = vmul.f32 %v1683, 0.70710677
      %v1714 = vmul.f32 %v1686, 0.70710677
      %v1715 = vmul.f32 %v1691, 0.70710677
      %v1716 = vmul.f32 %v1694, 0.70710677
      %v1717 = vmul.f32 %v1699, 0.70710677
      %v1718 = vmul.f32 %v1702, 0.70710677
      %v1719 = vmul.f32 %v1707, 0.70710677
      %v1720 = vmul.f32 %v1710, 0.70710677
      %vm1721 = vcmp.ge.f32.partialorder %v1713, 0.0
      %vm1722 = vcmp.ge.f32.partialorder %v1714, 0.0
      %vm1723 = vcmp.ge.f32.partialorder %v1715, 0.0
      %vm1724 = vcmp.ge.f32.partialorder %v1716, 0.0
      %vm1725 = vcmp.ge.f32.partialorder %v1717, 0.0
      %vm1726 = vcmp.ge.f32.partialorder %v1718, 0.0
      %vm1727 = vcmp.ge.f32.partialorder %v1719, 0.0
      %vm1728 = vcmp.ge.f32.partialorder %v1720, 0.0
      %v1729 = vsel %vm1721, 1.0, -1.0
      %v1730 = vsel %vm1722, 1.0, -1.0
      %v1731 = vsel %vm1723, 1.0, -1.0
      %v1732 = vsel %vm1724, 1.0, -1.0
      %v1733 = vsel %vm1725, 1.0, -1.0
      %v1734 = vsel %vm1726, 1.0, -1.0
      %v1735 = vsel %vm1727, 1.0, -1.0
      %v1736 = vsel %vm1728, 1.0, -1.0
      %v1737 = vand.u32 2147483647, %v1713
      %v1738 = vand.u32 2147483647, %v1714
      %v1739 = vand.u32 2147483647, %v1715
      %v1740 = vand.u32 2147483647, %v1716
      %v1741 = vand.u32 2147483647, %v1717
      %v1742 = vand.u32 2147483647, %v1718
      %v1743 = vand.u32 2147483647, %v1719
      %v1744 = vand.u32 2147483647, %v1720
      %v1745 = vmul.f32 %v1737, 0.3275911
      %v1746 = vmul.f32 %v1738, 0.3275911
      %v1747 = vmul.f32 %v1739, 0.3275911
      %v1748 = vmul.f32 %v1740, 0.3275911
      %v1749 = vmul.f32 %v1741, 0.3275911
      %v1750 = vmul.f32 %v1742, 0.3275911
      %v1751 = vmul.f32 %v1743, 0.3275911
      %v1752 = vmul.f32 %v1744, 0.3275911
      %v1753 = vadd.f32 %v1745, 1.0
      %v1754 = vadd.f32 %v1746, 1.0
      %v1755 = vadd.f32 %v1747, 1.0
      %v1756 = vadd.f32 %v1748, 1.0
      %v1757 = vadd.f32 %v1749, 1.0
      %v1758 = vadd.f32 %v1750, 1.0
      %v1759 = vadd.f32 %v1751, 1.0
      %v1760 = vadd.f32 %v1752, 1.0
      %v1761 = vrcp.pop %v1753
      %v1762 = vrcp.pop %v1754
      %v1763 = vrcp.pop %v1755
      %v1764 = vrcp.pop %v1756
      %v1765 = vrcp.pop %v1757
      %v1766 = vrcp.pop %v1758
      %v1767 = vrcp.pop %v1759
      %v1768 = vrcp.pop %v1760
      %v1769 = vmul.f32 %v1761, 1.0614054
      %v1770 = vmul.f32 %v1762, 1.0614054
      %v1771 = vmul.f32 %v1763, 1.0614054
      %v1772 = vmul.f32 %v1764, 1.0614054
      %v1773 = vmul.f32 %v1765, 1.0614054
      %v1774 = vmul.f32 %v1766, 1.0614054
      %v1775 = vmul.f32 %v1767, 1.0614054
      %v1776 = vmul.f32 %v1768, 1.0614054
      %v1777 = vadd.f32 %v1769, -1.4531521
      %v1778 = vadd.f32 %v1770, -1.4531521
      %v1779 = vadd.f32 %v1771, -1.4531521
      %v1780 = vadd.f32 %v1772, -1.4531521
      %v1781 = vadd.f32 %v1773, -1.4531521
      %v1782 = vadd.f32 %v1774, -1.4531521
      %v1783 = vadd.f32 %v1775, -1.4531521
      %v1784 = vadd.f32 %v1776, -1.4531521
      %v1785 = vmul.f32 %v1777, %v1761
      %v1786 = vmul.f32 %v1778, %v1762
      %v1787 = vmul.f32 %v1779, %v1763
      %v1788 = vmul.f32 %v1780, %v1764
      %v1789 = vmul.f32 %v1781, %v1765
      %v1790 = vmul.f32 %v1782, %v1766
      %v1791 = vmul.f32 %v1783, %v1767
      %v1792 = vmul.f32 %v1784, %v1768
      %v1793 = vadd.f32 %v1785, 1.4214138
      %v1794 = vadd.f32 %v1786, 1.4214138
      %v1795 = vadd.f32 %v1787, 1.4214138
      %v1796 = vadd.f32 %v1788, 1.4214138
      %v1797 = vadd.f32 %v1789, 1.4214138
      %v1798 = vadd.f32 %v1790, 1.4214138
      %v1799 = vadd.f32 %v1791, 1.4214138
      %v1800 = vadd.f32 %v1792, 1.4214138
      %v1801 = vmul.f32 %v1793, %v1761
      %v1802 = vmul.f32 %v1794, %v1762
      %v1803 = vmul.f32 %v1795, %v1763
      %v1804 = vmul.f32 %v1796, %v1764
      %v1805 = vmul.f32 %v1797, %v1765
      %v1806 = vmul.f32 %v1798, %v1766
      %v1807 = vmul.f32 %v1799, %v1767
      %v1808 = vmul.f32 %v1800, %v1768
      %v1809 = vadd.f32 %v1801, -0.28449672
      %v1810 = vadd.f32 %v1802, -0.28449672
      %v1811 = vadd.f32 %v1803, -0.28449672
      %v1812 = vadd.f32 %v1804, -0.28449672
      %v1813 = vadd.f32 %v1805, -0.28449672
      %v1814 = vadd.f32 %v1806, -0.28449672
      %v1815 = vadd.f32 %v1807, -0.28449672
      %v1816 = vadd.f32 %v1808, -0.28449672
      %v1817 = vmul.f32 %v1809, %v1761
      %v1818 = vmul.f32 %v1810, %v1762
      %v1819 = vmul.f32 %v1811, %v1763
      %v1820 = vmul.f32 %v1812, %v1764
      %v1821 = vmul.f32 %v1813, %v1765
      %v1822 = vmul.f32 %v1814, %v1766
      %v1823 = vmul.f32 %v1815, %v1767
      %v1824 = vmul.f32 %v1816, %v1768
      %v1825 = vadd.f32 %v1817, 0.2548296
      %v1826 = vadd.f32 %v1818, 0.2548296
      %v1827 = vadd.f32 %v1819, 0.2548296
      %v1828 = vadd.f32 %v1820, 0.2548296
      %v1829 = vadd.f32 %v1821, 0.2548296
      %v1830 = vadd.f32 %v1822, 0.2548296
      %v1831 = vadd.f32 %v1823, 0.2548296
      %v1832 = vadd.f32 %v1824, 0.2548296
      %v1833 = vmul.f32 %v1825, %v1761
      %v1834 = vmul.f32 %v1826, %v1762
      %v1835 = vmul.f32 %v1827, %v1763
      %v1836 = vmul.f32 %v1828, %v1764
      %v1837 = vmul.f32 %v1829, %v1765
      %v1838 = vmul.f32 %v1830, %v1766
      %v1839 = vmul.f32 %v1831, %v1767
      %v1840 = vmul.f32 %v1832, %v1768
      %v1841 = vsub.f32 0.0, %v1737
      %v1842 = vsub.f32 0.0, %v1738
      %v1843 = vsub.f32 0.0, %v1739
      %v1844 = vsub.f32 0.0, %v1740
      %v1845 = vsub.f32 0.0, %v1741
      %v1846 = vsub.f32 0.0, %v1742
      %v1847 = vsub.f32 0.0, %v1743
      %v1848 = vsub.f32 0.0, %v1744
      %v1849 = vmul.f32 %v1841, %v1737
      %v1850 = vmul.f32 %v1842, %v1738
      %v1851 = vmul.f32 %v1843, %v1739
      %v1852 = vmul.f32 %v1844, %v1740
      %v1853 = vmul.f32 %v1845, %v1741
      %v1854 = vmul.f32 %v1846, %v1742
      %v1855 = vmul.f32 %v1847, %v1743
      %v1856 = vmul.f32 %v1848, %v1744
      %v1857 = vmul.f32 %v1849, 1.442695
      %v1858 = vpow.pop %v1857
      %v1859 = vmul.f32 %v1850, 1.442695
      %v1860 = vpow.pop %v1859
      %v1861 = vmul.f32 %v1851, 1.442695
      %v1862 = vpow.pop %v1861
      %v1863 = vmul.f32 %v1852, 1.442695
      %v1864 = vpow.pop %v1863
      %v1865 = vmul.f32 %v1853, 1.442695
      %v1866 = vpow.pop %v1865
      %v1867 = vmul.f32 %v1854, 1.442695
      %v1868 = vpow.pop %v1867
      %v1869 = vmul.f32 %v1855, 1.442695
      %v1870 = vpow.pop %v1869
      %v1871 = vmul.f32 %v1856, 1.442695
      %v1872 = vpow.pop %v1871
      %v1873 = vmul.f32 %v1833, %v1858
      %v1874 = vmul.f32 %v1834, %v1860
      %v1875 = vmul.f32 %v1835, %v1862
      %v1876 = vmul.f32 %v1836, %v1864
      %v1877 = vmul.f32 %v1837, %v1866
      %v1878 = vmul.f32 %v1838, %v1868
      %v1879 = vmul.f32 %v1839, %v1870
      %v1880 = vmul.f32 %v1840, %v1872
      %v1881 = vsub.f32 1.0, %v1873
      %v1882 = vsub.f32 1.0, %v1874
      %v1883 = vsub.f32 1.0, %v1875
      %v1884 = vsub.f32 1.0, %v1876
      %v1885 = vsub.f32 1.0, %v1877
      %v1886 = vsub.f32 1.0, %v1878
      %v1887 = vsub.f32 1.0, %v1879
      %v1888 = vsub.f32 1.0, %v1880
      %v1889 = vmul.f32 %v1729, %v1881
      %v1890 = vmul.f32 %v1730, %v1882
      %v1891 = vmul.f32 %v1731, %v1883
      %v1892 = vmul.f32 %v1732, %v1884
      %v1893 = vmul.f32 %v1733, %v1885
      %v1894 = vmul.f32 %v1734, %v1886
      %v1895 = vmul.f32 %v1735, %v1887
      %v1896 = vmul.f32 %v1736, %v1888
      %v1897 = vmul.f32 %v1683, 0.5
      %v1898 = vmul.f32 %v1686, 0.5
      %v1899 = vmul.f32 %v1691, 0.5
      %v1900 = vmul.f32 %v1694, 0.5
      %v1901 = vmul.f32 %v1699, 0.5
      %v1902 = vmul.f32 %v1702, 0.5
      %v1903 = vmul.f32 %v1707, 0.5
      %v1904 = vmul.f32 %v1710, 0.5
      %v1905 = vadd.f32 %v1889, 1.0
      %v1906 = vadd.f32 %v1890, 1.0
      %v1907 = vadd.f32 %v1891, 1.0
      %v1908 = vadd.f32 %v1892, 1.0
      %v1909 = vadd.f32 %v1893, 1.0
      %v1910 = vadd.f32 %v1894, 1.0
      %v1911 = vadd.f32 %v1895, 1.0
      %v1912 = vadd.f32 %v1896, 1.0
      %v1913 = vmul.f32 %v1897, %v1905
      %v1914 = vmul.f32 %v1898, %v1906
      %v1915 = vmul.f32 %v1899, %v1907
      %v1916 = vmul.f32 %v1900, %v1908
      %v1917 = vmul.f32 %v1901, %v1909
      %v1918 = vmul.f32 %v1902, %v1910
      %v1919 = vmul.f32 %v1903, %v1911
      %v1920 = vmul.f32 %v1904, %v1912
      %v1921 = vpack.c.bf16 %v1914, %v1913
      %v1922 = vpack.c.bf16 %v1916, %v1915
      %v1923 = vpack.c.bf16 %v1918, %v1917
      %v1924 = vpack.c.bf16 %v1920, %v1919
      %v1925 = vld [vmem:[%s12] sm:$0xf]
      %v1926 = vld [vmem:[%s12 + $0x4] sm:$0xf]
      %v1927 = vld [vmem:[%s12 + $0x8] sm:$0xf]
      %v1928 = vld [vmem:[%s12 + $0xc] sm:$0xf]
      %v1929 = vld [vmem:[%s12 + $0x10] sm:$0xf]
      %v1930 = vld [vmem:[%s12 + $0x14] sm:$0xf]
      %v1931 = vld [vmem:[%s12 + $0x18] sm:$0xf]
      %v1932 = vld [vmem:[%s12 + $0x1c] sm:$0xf]
      %v1933 = vld [vmem:[%s12 + $0x20] sm:$0xf]
      %v1934 = vld [vmem:[%s12 + $0x24] sm:$0xf]
      %v1935 = vld [vmem:[%s12 + $0x28] sm:$0xf]
      %v1936 = vld [vmem:[%s12 + $0x2c] sm:$0xf]
      %v1937 = vld [vmem:[%s12 + $0x30] sm:$0xf]
      %v1938 = vld [vmem:[%s12 + $0x34] sm:$0xf]
      %v1939 = vld [vmem:[%s12 + $0x38] sm:$0xf]
      %v1940 = vld [vmem:[%s12 + $0x3c] sm:$0xf]
      %v1941 = vld [vmem:[%s13] sm:$0x1]
      %v1943 = vlaneseq
      %v1944 = vshrl.u32 %v1943, 7
      %v1945 = vsub.s32 0, %v1944
      %v1946 = vrot.slane %v1941, %v1945
      %v1964 = vunpack.c.l.b16 %v1925
      %v1965 = vunpack.c.l.b16 %v1926
      %v1966 = vunpack.c.l.b16 %v1927
      %v1967 = vunpack.c.l.b16 %v1928
      %v1968 = vunpack.c.l.b16 %v1929
      %v1969 = vunpack.c.l.b16 %v1930
      %v1970 = vunpack.c.l.b16 %v1931
      %v1971 = vunpack.c.l.b16 %v1932
      %v1972 = vunpack.c.l.b16 %v1933
      %v1973 = vunpack.c.l.b16 %v1934
      %v1974 = vunpack.c.l.b16 %v1935
      %v1975 = vunpack.c.l.b16 %v1936
      %v1976 = vunpack.c.l.b16 %v1937
      %v1977 = vunpack.c.l.b16 %v1938
      %v1978 = vunpack.c.l.b16 %v1939
      %v1979 = vunpack.c.l.b16 %v1940
      %v1980 = vpack.c.b16 %v1965, %v1964
      %v1981 = vpack.c.b16 %v1967, %v1966
      %v1982 = vpack.c.b16 %v1969, %v1968
      %v1983 = vpack.c.b16 %v1971, %v1970
      %v1984 = vpack.c.b16 %v1973, %v1972
      %v1985 = vpack.c.b16 %v1975, %v1974
      %v1986 = vpack.c.b16 %v1977, %v1976
      %v1987 = vpack.c.b16 %v1979, %v1978
      %1996 = vmatprep.subr.bf16.mxu0 0
      %1997 = vmatpush1.bf16.msra.mxu0 %v1980
      %1998 = vmatprep.subr.bf16.mxu0 0
      %1999 = vmatpush1.bf16.msra.mxu0 %v1981
      %2000 = vmatprep.subr.bf16.mxu0 0
      %2001 = vmatpush1.bf16.msra.mxu0 %v1982
      %2002 = vmatprep.subr.bf16.mxu0 0
      %2003 = vmatpush1.bf16.msra.mxu0 %v1983
      %2004 = vmatprep.subr.bf16.mxu0 0
      %2005 = vmatpush1.bf16.msra.mxu0 %v1984
      %2006 = vmatprep.subr.bf16.mxu0 0
      %2007 = vmatpush1.bf16.msra.mxu0 %v1985
      %2008 = vmatprep.subr.bf16.mxu0 0
      %2009 = vmatpush1.bf16.msra.mxu0 %v1986
      %2010 = vmatprep.subr.bf16.mxu0 0
      %2011 = vmatpush1.bf16.msra.mxu0 %v1987
      %2012 = vmatprep.subr.bf16.mxu0 0
      %2013 = vmatpush1.bf16.msra.mxu0 0
      %2014 = vmatprep.subr.bf16.mxu0 0
      %2015 = vmatpush1.bf16.msra.mxu0 0
      %2016 = vmatprep.subr.bf16.mxu0 0
      %2017 = vmatpush1.bf16.msra.mxu0 0
      %2018 = vmatprep.subr.bf16.mxu0 0
      %2019 = vmatpush1.bf16.msra.mxu0 0
      %2020 = vmatprep.subr.bf16.mxu0 0
      %2021 = vmatpush1.bf16.msra.mxu0 0
      %2022 = vmatprep.subr.bf16.mxu0 0
      %2023 = vmatpush1.bf16.msra.mxu0 0
      %2024 = vmatprep.subr.bf16.mxu0 0
      %2025 = vmatpush1.bf16.msra.mxu0 0
      %2026 = vmatprep.subr.bf16.mxu0 0
      %2027 = vmatpush1.bf16.msra.mxu0 0
      %2028 = vmatprep.mubr.bf16.mxu0 0
      %2029 = vmatmul.mubr.bf16.gmra.mrb[0].mxu0 %v1921
      %v2030 = vpop.f32.mrb[0].mxu0
      %v2031 = vadd.f32 %v1946, %v2030
      %v2032 = vpop.f32.mrb[0].mxu0
      %v2033 = vpop.f32.mrb[0].mxu0
      %v2034 = vadd.f32 %v1946, %v2033
      %v2035 = vpop.f32.mrb[0].mxu0
      %2036 = vmatprep.mubr.bf16.mxu0 0
      %2037 = vmatmul.mubr.bf16.gmra.mrb[0].mxu0 %v1922
      %v2038 = vpop.f32.mrb[0].mxu0
      %v2039 = vadd.f32 %v1946, %v2038
      %v2040 = vpop.f32.mrb[0].mxu0
      %v2041 = vpop.f32.mrb[0].mxu0
      %v2042 = vadd.f32 %v1946, %v2041
      %v2043 = vpop.f32.mrb[0].mxu0
      %2044 = vmatprep.mubr.bf16.mxu0 0
      %2045 = vmatmul.mubr.bf16.gmra.mrb[0].mxu0 %v1923
      %v2046 = vpop.f32.mrb[0].mxu0
      %v2047 = vadd.f32 %v1946, %v2046
      %v2048 = vpop.f32.mrb[0].mxu0
      %v2049 = vpop.f32.mrb[0].mxu0
      %v2050 = vadd.f32 %v1946, %v2049
      %v2051 = vpop.f32.mrb[0].mxu0
      %2052 = vmatprep.mubr.bf16.mxu0 0
      %2053 = vmatmul.mubr.bf16.gmra.mrb[0].mxu0 %v1924
      %v2054 = vpop.f32.mrb[0].mxu0
      %v2055 = vadd.f32 %v1946, %v2054
      %v2056 = vpop.f32.mrb[0].mxu0
      %v2057 = vpop.f32.mrb[0].mxu0
      %v2058 = vadd.f32 %v1946, %v2057
      %v2059 = vpop.f32.mrb[0].mxu0
      %2060 = vdwg.mxu0
      %v2061 = vadd.f32 %v1467, %v2031
      %v2062 = vadd.f32 %v1468, %v2034
      %v2063 = vadd.f32 %v1469, %v2039
      %v2064 = vadd.f32 %v1470, %v2042
      %v2065 = vadd.f32 %v1471, %v2047
      %v2066 = vadd.f32 %v1472, %v2050
      %v2067 = vadd.f32 %v1473, %v2055
      %v2068 = vadd.f32 %v1474, %v2058
      %2069 = vst.msk [vmem:[%s469] sm:$0xff] %vm482, %v2061
      %2070 = vst.msk [vmem:[%s469 + $0x8] sm:$0xff] %vm482, %v2062
      %2071 = vst.msk [vmem:[%s469 + $0x10] sm:$0xff] %vm482, %v2063
      %2072 = vst.msk [vmem:[%s469 + $0x18] sm:$0xff] %vm482, %v2064
      %2073 = vst.msk [vmem:[%s469 + $0x20] sm:$0xff] %vm482, %v2065
      %2074 = vst.msk [vmem:[%s469 + $0x28] sm:$0xff] %vm482, %v2066
      %2075 = vst.msk [vmem:[%s469 + $0x30] sm:$0xff] %vm482, %v2067
      %2076 = vst.msk [vmem:[%s469 + $0x38] sm:$0xff] %vm482, %v2068
      %s2077 = smul.u32 8, %s25
      %p2078 = scmp.lt.s32.totalorder %s2077, 15
      %s2079 = scalar_select %p2078, %s2077, 15
      %s2080 = smul.addr %s2079, 8
      %s2081 = scalar_lea.vmem %s14, %s2080
      // Predicated region
      $region77: #{basic_layer_forward.2} parent=75 // pred_check
        %p2082 = pneg %p342
      $region78: #{basic_layer_forward.2} parent=75 // pred_check_branch
        %2084 = sbr.rel (%p2082) target = $region80
      $region79: #{basic_layer_forward.2} parent=75 // pred_region
        %s2085 = smul.u32 8, %s25
      $region80: #{basic_layer_forward.2} parent=75 // pred_fallthru
        _
    $region76: #{basic_layer_forward.2} parent=5 // pred_fallthru
      _
    %p2086 = scmp.le.s32.totalorder 2, %s20
    // Predicated region
    $region81: #{basic_layer_forward.2} parent=5 // pred_check
      %p2087 = pneg %p2086
    $region82: #{basic_layer_forward.2} parent=5 // pred_check_branch
      %2089 = sbr.rel (%p2087) target = $region84
    $region83: #{basic_layer_forward.2} parent=5 // pred_region
      %s2090 = ssub.s32 %s20, 2
      // Predicated region
      $region85: #{basic_layer_forward.2} parent=83 // pred_check
        %p2091 = pneg %p348
      $region86: #{basic_layer_forward.2} parent=83 // pred_check_branch
        %2093 = sbr.rel (%p2091) target = $region88
      $region87: #{basic_layer_forward.2} parent=83 // pred_region
        %s2094 = smul.u32 8, %s26
        %p2095 = scmp.lt.s32.totalorder %s2094, 15
        %s2096 = scalar_select %p2095, %s2094, 15
        %s2097 = smul.addr %s2096, 8
        %s2098 = scalar_lea.vmem %s14, %s2097
      $region88: #{basic_layer_forward.2} parent=83 // pred_fallthru
        _
    $region84: #{basic_layer_forward.2} parent=5 // pred_fallthru
      _
  $region6: #{basic_layer_forward.2} parent=0 // loop_footer
    %s24 = sadd.s32 1, %s20
  $region7: #{basic_layer_forward.2} parent=0 // loop_footer_branch
    %19 = sbr.rel target = $region3
  $region8: #{basic_layer_forward.2} parent=0 // loop_exit
    _

</llo_original>
